<compile_context>
chip_gen: v6e
topology: v6e:2x2x1
jax: 0.10.0
libtpu: 0.0.40
codegen_flags: <defaults>
</compile_context>

<pallas_src>
import functools

import jax
import jax.numpy as jnp
from jax.experimental import pallas as pl
from jax.experimental.pallas import tpu as pltpu


# ----------------------------- Pallas kernel ---------------------------------
def _node_encoder_kernel(
    x_ref, a_ref,
    w_in_ref, b_in_ref,
    w_self_ref, b_self_ref, w_msg_ref, b_msg_ref,
    w_out_ref, b_out_ref,
    wg1_ref, bg1_ref, wg2_ref, bg2_ref, wg3_ref, bg3_ref,
    xout_ref, g_ref,
    *, graphs_per_block, nodes_per_graph,
):
    """One grid step == G graphs (R = G*n rows, all 2-D activations).
       input_proj -> L * (graph conv via block-diag matmul + gelu) -> output_proj,
       node pooling (mean/max/sum/std) -> graph_proj MLP."""
    G = graphs_per_block
    n = nodes_per_graph
    H = w_in_ref.shape[1]
    bf16 = jnp.bfloat16
    f32 = jnp.float32

    x = x_ref[...]                                   # (R, din) bf16 (pre-cast in wrapper)
    adj = a_ref[...]                                 # (R, R) bf16 block-diagonal, adj[i,j]=w(j->i)

    # input_proj: one MXU matmul over all R rows
    h = jnp.dot(x, w_in_ref[...], preferred_element_type=f32) + b_in_ref[...]

    num_layers = w_self_ref.shape[0]
    for l in range(num_layers):                      # static unroll, num_layers is small
        hb = h.astype(bf16)
        # H=32 is not a multiple of 128 -> keep self/msg as separate matmuls (a fused (H,2H)
        # weight would need a non-lane-aligned split of the result).
        slf = jnp.dot(hb, w_self_ref[l], preferred_element_type=f32) + b_self_ref[l]
        msg = jnp.dot(hb, w_msg_ref[l], preferred_element_type=f32) + b_msg_ref[l]
        # one block-diagonal (R,R)@(R,H) matmul per layer -- no per-graph einsum / 3-D reshapes
        agg = jnp.dot(adj, msg.astype(bf16), preferred_element_type=f32)
        h = jax.nn.gelu(slf + agg, approximate=True)

    # output_proj (per-node embeddings); w_out/b_out are lane-padded to 128 -> lane-dense store
    hb = h.astype(bf16)
    xout_ref[...] = jnp.dot(hb, w_out_ref[...], preferred_element_type=f32) + b_out_ref[...]

    # pooling over nodes ('mean','max','sum','std'); single sublane-split reshape at the end
    h3 = h.reshape(G, n, H)
    sm = jnp.sum(h3, axis=1)                         # (G, H)
    mean = sm * (1.0 / n)
    mx = jnp.max(h3, axis=1)
    inv_nm1 = 1.0 / max(n - 1, 1)                    # torch.std unbiased; guard n==1
    var = jnp.sum((h3 - mean[:, None, :]) ** 2, axis=1) * inv_nm1
    std = jnp.sqrt(var)

    # graph_proj layer 1 without a lane-axis concat: wg1 pre-split into 4 (H,H) chunks
    g = (jnp.dot(mean.astype(bf16), wg1_ref[0], preferred_element_type=f32)
         + jnp.dot(mx.astype(bf16),  wg1_ref[1], preferred_element_type=f32)
         + jnp.dot(sm.astype(bf16),  wg1_ref[2], preferred_element_type=f32)
         + jnp.dot(std.astype(bf16), wg1_ref[3], preferred_element_type=f32)
         + bg1_ref[...])
    g = jax.nn.gelu(g, approximate=True)
    g = jax.nn.gelu(jnp.dot(g.astype(bf16), wg2_ref[...], preferred_element_type=f32)
                    + bg2_ref[...], approximate=True)
    # wg3/bg3 lane-padded to 128 -> lane-dense graph-embedding store
    g_ref[0] = jnp.dot(g.astype(bf16), wg3_ref[...], preferred_element_type=f32) + bg3_ref[...]


# ------------------------------ wrapper ---------------------------------------
_LANE = 128


def _round_up(x, m):
    return ((x + m - 1) // m) * m


def _shared_spec(shape):
    nd = len(shape)
    return pl.BlockSpec(shape, lambda b, _nd=nd: (0,) * _nd)


def _num_tensorcores():
    """Best-effort TensorCores-per-chip query; default 1 (v5e/v6e-style) if unknown."""
    try:
        info = pltpu.get_tpu_info()
        for attr in ("num_cores", "num_tensorcores", "tensorcores_per_chip", "cores_per_chip"):
            v = getattr(info, attr, None)
            if isinstance(v, int) and v > 0:
                return v
    except Exception:
        pass
    try:
        v = getattr(jax.devices()[0], "num_cores", None)
        if isinstance(v, int) and v > 0:
            return v
    except Exception:
        pass
    return 1


def _pick_graphs_per_block(bs, n):
    """Pack graphs so each block has ~1024 node rows (grid-step overhead dominates at these
    dims), capped so the block-diagonal adjacency stays well under the scoped VMEM default.
    On multi-TC chips (v7x) keep >=2 grid steps so ("parallel",) feeds both TensorCores;
    on single-TC chips (v5e/v6e) just take the largest block. G must divide bs."""
    target_rows = 1024
    while target_rows > 8 and 2 * target_rows * target_rows > (8 << 20):  # bf16 adj < 8 MiB
        target_rows //= 2
    target = max(1, target_rows // max(n, 1))
    divisors = [d for d in range(1, bs + 1) if bs % d == 0]
    cand = [d for d in divisors if d <= target] or [1]
    g = max(cand)
    if _num_tensorcores() >= 2 and bs >= 2 and bs // g < 2:
        cand2 = [d for d in cand if bs // d >= 2]
        if cand2:
            g = max(cand2)
    return g


def _pad_last(a, to):
    pad = to - a.shape[-1]
    if pad <= 0:
        return a
    return jnp.pad(a, [(0, 0)] * (a.ndim - 1) + [(0, pad)])


def _prepare_params(params, dpad):
    """Split wg1 into 4 pooling chunks, lane-pad output projections, cast matmul weights bf16."""
    bf16 = jnp.bfloat16
    f32 = jnp.float32
    H = params["w_in"].shape[1]
    return dict(
        w_in=params["w_in"].astype(bf16), b_in=params["b_in"].astype(f32),
        w_self=params["w_self"].astype(bf16), b_self=params["b_self"].astype(f32),
        w_msg=params["w_msg"].astype(bf16), b_msg=params["b_msg"].astype(f32),
        w_out=_pad_last(params["w_out"], dpad).astype(bf16),
        b_out=_pad_last(params["b_out"], dpad).astype(f32),
        wg1=params["wg1"].reshape(4, H, H).astype(bf16),   # [mean; max; sum; std] row blocks
        bg1=params["bg1"].astype(f32),
        wg2=params["wg2"].astype(bf16), bg2=params["bg2"].astype(f32),
        wg3=_pad_last(params["wg3"], dpad).astype(bf16),
        bg3=_pad_last(params["bg3"], dpad).astype(f32),
    )


def _estimate_vmem_bytes(R, din, H, dpad, L, G):
    bf, f4 = 2, 4
    blocks = 2 * (R * din * bf + R * R * bf + R * dpad * f4 + G * dpad * f4)  # dbl-buffered blocks
    weights = 2 * bf * (din * H + 2 * L * H * H + 5 * H * H + 2 * H * dpad)   # dbl-buffered weights
    weights += 2 * f4 * ((2 * L + 3) * H + 2 * dpad)
    inter = 8 * R * H * f4                                                    # h/slf/msg/agg temps
    return blocks + weights + inter


def node_encoder_forward(params, x, e, w, bs, graphs_per_block=None):
    """Mirrors NodeEncoder.forward(x, e, w, bs) -> (node_emb, graph_emb).

    x: (bs, n, input_dim) float32
    e: (2, E) int32 global node indices [src; dst]   (edges assumed within-graph)
    w: (E,) float32 edge weights
    """
    bs_, n, din = x.shape
    assert bs_ == bs
    H = params["w_in"].shape[1]
    dout = params["w_out"].shape[1]
    L = params["w_self"].shape[0]
    dpad = max(_LANE, _round_up(dout, _LANE))

    G = graphs_per_block if graphs_per_block is not None else _pick_graphs_per_block(bs, n)
    assert bs % G == 0
    nblk = bs // G
    R = G * n

    # --- glue: block-diagonal adjacency via one-hot matmul (no XLA scatter) ---
    # adj_blk[block*R + local_dst, local_src] = sum of edge weights dst<-src.
    src, dst = e[0], e[1]
    row_oh = (dst[:, None] == jnp.arange(bs * n, dtype=dst.dtype)[None, :]).astype(jnp.float32)
    col_oh = ((src % R)[:, None] == jnp.arange(R, dtype=src.dtype)[None, :]).astype(jnp.float32)
    adj = jnp.einsum("er,ec->rc", row_oh * w[:, None].astype(jnp.float32), col_oh,
                     precision=jax.lax.Precision.HIGHEST)          # (bs*n, R) f32, exact
    adj = adj.astype(jnp.bfloat16)
    # TODO(synk): adjacency aggregated in bf16 (reference uses the same cast); torch uses f32.

    p = _prepare_params(params, dpad)
    x2 = x.reshape(bs * n, din).astype(jnp.bfloat16)               # 2-D, bf16 (halves DMA bytes)

    in_arrays = (
        x2, adj,
        p["w_in"], p["b_in"],
        p["w_self"], p["b_self"], p["w_msg"], p["b_msg"],
        p["w_out"], p["b_out"],
        p["wg1"], p["bg1"], p["wg2"], p["bg2"], p["wg3"], p["bg3"],
    )
    # constant-index weight specs stay resident across grid steps (still double-buffered in VMEM)
    in_specs = [
        pl.BlockSpec((R, din), lambda b: (b, 0)),
        pl.BlockSpec((R, R), lambda b: (b, 0)),
    ] + [_shared_spec(a.shape) for a in in_arrays[2:]]

    out_shape = (
        jax.ShapeDtypeStruct((bs * n, dpad), jnp.float32),         # node embeddings (lane-padded)
        jax.ShapeDtypeStruct((nblk, G, dpad), jnp.float32),        # graph embeddings (blocked)
    )
    out_specs = (
        pl.BlockSpec((R, dpad), lambda b: (b, 0)),
        pl.BlockSpec((1, G, dpad), lambda b: (b, 0, 0)),
    )

    vmem_limit = None
    est = _estimate_vmem_bytes(R, din, H, dpad, L, G)
    if est > (32 << 20):                                           # above default scoped VMEM
        vmem_limit = int(min(est + (4 << 20), 64 << 20))           # cap at v7x physical VMEM

    kernel = functools.partial(_node_encoder_kernel, graphs_per_block=G, nodes_per_graph=n)
    x_out, g = pl.pallas_call(
        kernel,
        out_shape=out_shape,
        grid=(nblk,),
        in_specs=in_specs,
        out_specs=out_specs,
        compiler_params=pltpu.CompilerParams(
            dimension_semantics=("parallel",),
            vmem_limit_bytes=vmem_limit),
    )(*in_arrays)

    x_out = x_out[:, :dout].reshape(bs, n, dout)
    g = g.reshape(bs, dpad)[:, :dout]
    return x_out, g


# ------------------------------ params ----------------------------------------
def init_params(key, input_dim, hidden_dim, output_dim, num_layers):
    ks = jax.random.split(key, 16)
    s = 0.1
    return {
        "w_in":   s * jax.random.normal(ks[0], (input_dim, hidden_dim), jnp.float32),
        "b_in":   s * jax.random.normal(ks[1], (1, hidden_dim), jnp.float32),
        "w_self": s * jax.random.normal(ks[2], (num_layers, hidden_dim, hidden_dim), jnp.float32),
        "b_self": s * jax.random.normal(ks[3], (num_layers, 1, hidden_dim), jnp.float32),
        "w_msg":  s * jax.random.normal(ks[4], (num_layers, hidden_dim, hidden_dim), jnp.float32),
        "b_msg":  s * jax.random.normal(ks[5], (num_layers, 1, hidden_dim), jnp.float32),
        "w_out":  s * jax.random.normal(ks[6], (hidden_dim, output_dim), jnp.float32),
        "b_out":  s * jax.random.normal(ks[7], (1, output_dim), jnp.float32),
        "wg1":    s * jax.random.normal(ks[8], (4 * hidden_dim, hidden_dim), jnp.float32),
        "bg1":    s * jax.random.normal(ks[9], (1, hidden_dim), jnp.float32),
        "wg2":    s * jax.random.normal(ks[10], (hidden_dim, hidden_dim), jnp.float32),
        "bg2":    s * jax.random.normal(ks[11], (1, hidden_dim), jnp.float32),
        "wg3":    s * jax.random.normal(ks[12], (hidden_dim, output_dim), jnp.float32),
        "bg3":    s * jax.random.normal(ks[13], (1, output_dim), jnp.float32),
    }


# ------------------------------ reference (pure JAX) ---------------------------
def _mm(a, w):
    # same bf16-input / f32-accumulate matmul semantics as the kernel
    return jnp.matmul(a.astype(jnp.bfloat16), w.astype(jnp.bfloat16),
                      preferred_element_type=jnp.float32)


def ref_forward(params, x, adj):
    h = _mm(x, params["w_in"]) + params["b_in"]
    n = x.shape[1]
    for l in range(params["w_self"].shape[0]):
        slf = _mm(h, params["w_self"][l]) + params["b_self"][l]
        msg = _mm(h, params["w_msg"][l]) + params["b_msg"][l]
        agg = jnp.einsum("bij,bjh->bih", adj.astype(jnp.bfloat16),
                         msg.astype(jnp.bfloat16), preferred_element_type=jnp.float32)
        h = jax.nn.gelu(slf + agg, approximate=True)
    x_out = _mm(h, params["w_out"]) + params["b_out"]
    sm = h.sum(axis=1)
    mean = sm / n
    mx = h.max(axis=1)
    std = jnp.sqrt(((h - mean[:, None, :]) ** 2).sum(axis=1) / max(n - 1, 1))
    g = jnp.concatenate([mean, mx, sm, std], axis=-1)
    g = jax.nn.gelu(_mm(g, params["wg1"]) + params["bg1"], approximate=True)
    g = jax.nn.gelu(_mm(g, params["wg2"]) + params["bg2"], approximate=True)
    g = _mm(g, params["wg3"]) + params["bg3"]
    return x_out, g


# ------------------------------ main -------------------------------------------
if __name__ == "__main__":
    bs, n = 2, 8
    input_dim, hidden_dim, output_dim, num_layers = 4, 32, 16, 3

    key = jax.random.PRNGKey(0)
    k_x, k_w, k_p = jax.random.split(key, 3)

    x = jax.random.normal(k_x, (bs, n, input_dim), jnp.float32)

    # ring graph per batch element (both directions), global node indices
    src, dst = [], []
    for b in range(bs):
        for i in range(n):
            a_ = b * n + i
            c_ = b * n + (i + 1) % n
            src += [a_, c_]
            dst += [c_, a_]
    e = jnp.array([src, dst], dtype=jnp.int32)                    # (2, E)
    wgt = jax.random.uniform(k_w, (e.shape[1],), jnp.float32)     # (E,)

    params = init_params(k_p, input_dim, hidden_dim, output_dim, num_layers)

    x_emb, g_emb = node_encoder_forward(params, x, e, wgt, bs)
    jax.block_until_ready((x_emb, g_emb))

    # correctness check against pure-JAX reference (same bf16 matmul semantics)
    adj_ref = jnp.zeros((bs, n, n), jnp.float32).at[e[1] // n, e[1] % n, e[0] % n].add(wgt)
    adj_ref = adj_ref.astype(jnp.bfloat16)
    x_ref, g_ref = ref_forward(params, x, adj_ref)

    assert x_emb.shape == (bs, n, output_dim)
    assert g_emb.shape == (bs, output_dim)
    assert jnp.allclose(x_emb, x_ref, atol=2e-3, rtol=2e-3)
    assert jnp.allclose(g_emb, g_ref, atol=2e-3, rtol=2e-3)

    print("KERNEL_OK")
</pallas_src>

<mosaic_0001>
module attributes {stable_mosaic.version = 11 : i64} {
  func.func @_node_encoder_kernel(%arg0: i32, %arg1: memref<16x4xbf16, #tpu.memory_space<vmem>>, %arg2: memref<16x16xbf16, #tpu.memory_space<vmem>>, %arg3: memref<4x32xbf16, #tpu.memory_space<vmem>>, %arg4: memref<1x32xf32, #tpu.memory_space<vmem>>, %arg5: memref<3x32x32xbf16, #tpu.memory_space<vmem>>, %arg6: memref<3x1x32xf32, #tpu.memory_space<vmem>>, %arg7: memref<3x32x32xbf16, #tpu.memory_space<vmem>>, %arg8: memref<3x1x32xf32, #tpu.memory_space<vmem>>, %arg9: memref<32x128xbf16, #tpu.memory_space<vmem>>, %arg10: memref<1x128xf32, #tpu.memory_space<vmem>>, %arg11: memref<4x32x32xbf16, #tpu.memory_space<vmem>>, %arg12: memref<1x32xf32, #tpu.memory_space<vmem>>, %arg13: memref<32x32xbf16, #tpu.memory_space<vmem>>, %arg14: memref<1x32xf32, #tpu.memory_space<vmem>>, %arg15: memref<32x128xbf16, #tpu.memory_space<vmem>>, %arg16: memref<1x128xf32, #tpu.memory_space<vmem>>, %arg17: memref<16x128xf32, #tpu.memory_space<vmem>>, %arg18: memref<1x2x128xf32, #tpu.memory_space<vmem>>) attributes {dimension_semantics = [#tpu.dimension_semantics<parallel>], iteration_bounds = array<i64: 1>, scalar_prefetch = 0 : i64, scratch_operands = 0 : i64, tpu.core_type = #tpu.core_type<tc>, window_params = [{transform_indices = @transform_0, window_bounds = array<i64: 16, 4>}, {transform_indices = @transform_1, window_bounds = array<i64: 16, 16>}, {pipeline_mode = #tpu.pipeline_mode<synchronous>, transform_indices = @transform_2, window_bounds = array<i64: 4, 32>}, {pipeline_mode = #tpu.pipeline_mode<synchronous>, transform_indices = @transform_3, window_bounds = array<i64: 1, 32>}, {pipeline_mode = #tpu.pipeline_mode<synchronous>, transform_indices = @transform_4, window_bounds = array<i64: 3, 32, 32>}, {pipeline_mode = #tpu.pipeline_mode<synchronous>, transform_indices = @transform_5, window_bounds = array<i64: 3, 1, 32>}, {pipeline_mode = #tpu.pipeline_mode<synchronous>, transform_indices = @transform_6, window_bounds = array<i64: 3, 32, 32>}, {pipeline_mode = #tpu.pipeline_mode<synchronous>, transform_indices = @transform_7, window_bounds = array<i64: 3, 1, 32>}, {pipeline_mode = #tpu.pipeline_mode<synchronous>, transform_indices = @transform_8, window_bounds = array<i64: 32, 128>}, {pipeline_mode = #tpu.pipeline_mode<synchronous>, transform_indices = @transform_9, window_bounds = array<i64: 1, 128>}, {pipeline_mode = #tpu.pipeline_mode<synchronous>, transform_indices = @transform_10, window_bounds = array<i64: 4, 32, 32>}, {pipeline_mode = #tpu.pipeline_mode<synchronous>, transform_indices = @transform_11, window_bounds = array<i64: 1, 32>}, {pipeline_mode = #tpu.pipeline_mode<synchronous>, transform_indices = @transform_12, window_bounds = array<i64: 32, 32>}, {pipeline_mode = #tpu.pipeline_mode<synchronous>, transform_indices = @transform_13, window_bounds = array<i64: 1, 32>}, {pipeline_mode = #tpu.pipeline_mode<synchronous>, transform_indices = @transform_14, window_bounds = array<i64: 32, 128>}, {pipeline_mode = #tpu.pipeline_mode<synchronous>, transform_indices = @transform_15, window_bounds = array<i64: 1, 128>}, {transform_indices = @transform_16, window_bounds = array<i64: 16, 128>}, {transform_indices = @transform_17, window_bounds = array<i64: 1, 2, 128>}]} {
    %c0 = arith.constant 0 : index
    %c0_0 = arith.constant 0 : index
    %0 = vector.load %arg1[%c0, %c0_0] : memref<16x4xbf16, #tpu.memory_space<vmem>>, vector<16x4xbf16>
    %c0_1 = arith.constant 0 : index
    %c0_2 = arith.constant 0 : index
    %1 = vector.load %arg2[%c0_1, %c0_2] : memref<16x16xbf16, #tpu.memory_space<vmem>>, vector<16x16xbf16>
    %c0_3 = arith.constant 0 : index
    %c0_4 = arith.constant 0 : index
    %2 = vector.load %arg3[%c0_3, %c0_4] : memref<4x32xbf16, #tpu.memory_space<vmem>>, vector<4x32xbf16>
    %cst = arith.constant dense<0.000000e+00> : vector<16x32xf32>
    %3 = tpu.matmul %0, %2, %cst {dimension_numbers = #tpu.dot_dimension_numbers<[1], [0], [0], [1], [0, 0, 1, 1], [], []>} : vector<16x4xbf16>, vector<4x32xbf16>, vector<16x32xf32> -> vector<16x32xf32>
    %c0_5 = arith.constant 0 : index
    %c0_6 = arith.constant 0 : index
    %4 = vector.load %arg4[%c0_5, %c0_6] : memref<1x32xf32, #tpu.memory_space<vmem>>, vector<1x32xf32>
    %5 = vector.broadcast %4 : vector<1x32xf32> to vector<16x32xf32>
    %6 = arith.addf %3, %5 : vector<16x32xf32>
    %7 = arith.truncf %6 : vector<16x32xf32> to vector<16x32xbf16>
    %c0_7 = arith.constant 0 : index
    %c0_8 = arith.constant 0 : index
    %c0_9 = arith.constant 0 : index
    %8 = vector.load %arg5[%c0_7, %c0_8, %c0_9] : memref<3x32x32xbf16, #tpu.memory_space<vmem>>, vector<1x32x32xbf16>
    %9 = vector.shape_cast %8 : vector<1x32x32xbf16> to vector<32x32xbf16>
    %cst_10 = arith.constant dense<0.000000e+00> : vector<16x32xf32>
    %10 = tpu.matmul %7, %9, %cst_10 {dimension_numbers = #tpu.dot_dimension_numbers<[1], [0], [0], [1], [0, 0, 1, 1], [], []>} : vector<16x32xbf16>, vector<32x32xbf16>, vector<16x32xf32> -> vector<16x32xf32>
    %c0_11 = arith.constant 0 : index
    %c0_12 = arith.constant 0 : index
    %c0_13 = arith.constant 0 : index
    %11 = vector.load %arg6[%c0_11, %c0_12, %c0_13] : memref<3x1x32xf32, #tpu.memory_space<vmem>>, vector<1x1x32xf32>
    %12 = vector.shape_cast %11 : vector<1x1x32xf32> to vector<1x32xf32>
    %13 = vector.broadcast %12 : vector<1x32xf32> to vector<16x32xf32>
    %14 = arith.addf %10, %13 : vector<16x32xf32>
    %c0_14 = arith.constant 0 : index
    %c0_15 = arith.constant 0 : index
    %c0_16 = arith.constant 0 : index
    %15 = vector.load %arg7[%c0_14, %c0_15, %c0_16] : memref<3x32x32xbf16, #tpu.memory_space<vmem>>, vector<1x32x32xbf16>
    %16 = vector.shape_cast %15 : vector<1x32x32xbf16> to vector<32x32xbf16>
    %cst_17 = arith.constant dense<0.000000e+00> : vector<16x32xf32>
    %17 = tpu.matmul %7, %16, %cst_17 {dimension_numbers = #tpu.dot_dimension_numbers<[1], [0], [0], [1], [0, 0, 1, 1], [], []>} : vector<16x32xbf16>, vector<32x32xbf16>, vector<16x32xf32> -> vector<16x32xf32>
    %c0_18 = arith.constant 0 : index
    %c0_19 = arith.constant 0 : index
    %c0_20 = arith.constant 0 : index
    %18 = vector.load %arg8[%c0_18, %c0_19, %c0_20] : memref<3x1x32xf32, #tpu.memory_space<vmem>>, vector<1x1x32xf32>
    %19 = vector.shape_cast %18 : vector<1x1x32xf32> to vector<1x32xf32>
    %20 = vector.broadcast %19 : vector<1x32xf32> to vector<16x32xf32>
    %21 = arith.addf %17, %20 : vector<16x32xf32>
    %22 = arith.truncf %21 : vector<16x32xf32> to vector<16x32xbf16>
    %cst_21 = arith.constant dense<0.000000e+00> : vector<16x32xf32>
    %23 = tpu.matmul %1, %22, %cst_21 {dimension_numbers = #tpu.dot_dimension_numbers<[1], [0], [0], [1], [0, 0, 1, 1], [], []>} : vector<16x16xbf16>, vector<16x32xbf16>, vector<16x32xf32> -> vector<16x32xf32>
    %24 = arith.addf %14, %23 : vector<16x32xf32>
    %25 = arith.mulf %24, %24 : vector<16x32xf32>
    %26 = arith.mulf %24, %25 : vector<16x32xf32>
    %cst_22 = arith.constant 4.471500e-02 : f32
    %27 = vector.broadcast %cst_22 : f32 to vector<16x32xf32>
    %28 = arith.mulf %27, %26 : vector<16x32xf32>
    %29 = arith.addf %24, %28 : vector<16x32xf32>
    %cst_23 = arith.constant 0.797884583 : f32
    %30 = vector.broadcast %cst_23 : f32 to vector<16x32xf32>
    %31 = arith.mulf %30, %29 : vector<16x32xf32>
    %32 = math.tanh %31 : vector<16x32xf32>
    %cst_24 = arith.constant 1.000000e+00 : f32
    %33 = vector.broadcast %cst_24 : f32 to vector<16x32xf32>
    %34 = arith.addf %33, %32 : vector<16x32xf32>
    %cst_25 = arith.constant 5.000000e-01 : f32
    %35 = vector.broadcast %cst_25 : f32 to vector<16x32xf32>
    %36 = arith.mulf %35, %34 : vector<16x32xf32>
    %37 = arith.mulf %24, %36 : vector<16x32xf32>
    %38 = arith.truncf %37 : vector<16x32xf32> to vector<16x32xbf16>
    %c1 = arith.constant 1 : index
    %c0_26 = arith.constant 0 : index
    %c0_27 = arith.constant 0 : index
    %39 = vector.load %arg5[%c1, %c0_26, %c0_27] : memref<3x32x32xbf16, #tpu.memory_space<vmem>>, vector<1x32x32xbf16>
    %40 = vector.shape_cast %39 : vector<1x32x32xbf16> to vector<32x32xbf16>
    %cst_28 = arith.constant dense<0.000000e+00> : vector<16x32xf32>
    %41 = tpu.matmul %38, %40, %cst_28 {dimension_numbers = #tpu.dot_dimension_numbers<[1], [0], [0], [1], [0, 0, 1, 1], [], []>} : vector<16x32xbf16>, vector<32x32xbf16>, vector<16x32xf32> -> vector<16x32xf32>
    %c1_29 = arith.constant 1 : index
    %c0_30 = arith.constant 0 : index
    %c0_31 = arith.constant 0 : index
    %42 = vector.load %arg6[%c1_29, %c0_30, %c0_31] : memref<3x1x32xf32, #tpu.memory_space<vmem>>, vector<1x1x32xf32>
    %43 = vector.shape_cast %42 : vector<1x1x32xf32> to vector<1x32xf32>
    %44 = vector.broadcast %43 : vector<1x32xf32> to vector<16x32xf32>
    %45 = arith.addf %41, %44 : vector<16x32xf32>
    %c1_32 = arith.constant 1 : index
    %c0_33 = arith.constant 0 : index
    %c0_34 = arith.constant 0 : index
    %46 = vector.load %arg7[%c1_32, %c0_33, %c0_34] : memref<3x32x32xbf16, #tpu.memory_space<vmem>>, vector<1x32x32xbf16>
    %47 = vector.shape_cast %46 : vector<1x32x32xbf16> to vector<32x32xbf16>
    %cst_35 = arith.constant dense<0.000000e+00> : vector<16x32xf32>
    %48 = tpu.matmul %38, %47, %cst_35 {dimension_numbers = #tpu.dot_dimension_numbers<[1], [0], [0], [1], [0, 0, 1, 1], [], []>} : vector<16x32xbf16>, vector<32x32xbf16>, vector<16x32xf32> -> vector<16x32xf32>
    %c1_36 = arith.constant 1 : index
    %c0_37 = arith.constant 0 : index
    %c0_38 = arith.constant 0 : index
    %49 = vector.load %arg8[%c1_36, %c0_37, %c0_38] : memref<3x1x32xf32, #tpu.memory_space<vmem>>, vector<1x1x32xf32>
    %50 = vector.shape_cast %49 : vector<1x1x32xf32> to vector<1x32xf32>
    %51 = vector.broadcast %50 : vector<1x32xf32> to vector<16x32xf32>
    %52 = arith.addf %48, %51 : vector<16x32xf32>
    %53 = arith.truncf %52 : vector<16x32xf32> to vector<16x32xbf16>
    %cst_39 = arith.constant dense<0.000000e+00> : vector<16x32xf32>
    %54 = tpu.matmul %1, %53, %cst_39 {dimension_numbers = #tpu.dot_dimension_numbers<[1], [0], [0], [1], [0, 0, 1, 1], [], []>} : vector<16x16xbf16>, vector<16x32xbf16>, vector<16x32xf32> -> vector<16x32xf32>
    %55 = arith.addf %45, %54 : vector<16x32xf32>
    %56 = arith.mulf %55, %55 : vector<16x32xf32>
    %57 = arith.mulf %55, %56 : vector<16x32xf32>
    %cst_40 = arith.constant 4.471500e-02 : f32
    %58 = vector.broadcast %cst_40 : f32 to vector<16x32xf32>
    %59 = arith.mulf %58, %57 : vector<16x32xf32>
    %60 = arith.addf %55, %59 : vector<16x32xf32>
    %cst_41 = arith.constant 0.797884583 : f32
    %61 = vector.broadcast %cst_41 : f32 to vector<16x32xf32>
    %62 = arith.mulf %61, %60 : vector<16x32xf32>
    %63 = math.tanh %62 : vector<16x32xf32>
    %cst_42 = arith.constant 1.000000e+00 : f32
    %64 = vector.broadcast %cst_42 : f32 to vector<16x32xf32>
    %65 = arith.addf %64, %63 : vector<16x32xf32>
    %cst_43 = arith.constant 5.000000e-01 : f32
    %66 = vector.broadcast %cst_43 : f32 to vector<16x32xf32>
    %67 = arith.mulf %66, %65 : vector<16x32xf32>
    %68 = arith.mulf %55, %67 : vector<16x32xf32>
    %69 = arith.truncf %68 : vector<16x32xf32> to vector<16x32xbf16>
    %c2 = arith.constant 2 : index
    %c0_44 = arith.constant 0 : index
    %c0_45 = arith.constant 0 : index
    %70 = vector.load %arg5[%c2, %c0_44, %c0_45] : memref<3x32x32xbf16, #tpu.memory_space<vmem>>, vector<1x32x32xbf16>
    %71 = vector.shape_cast %70 : vector<1x32x32xbf16> to vector<32x32xbf16>
    %cst_46 = arith.constant dense<0.000000e+00> : vector<16x32xf32>
    %72 = tpu.matmul %69, %71, %cst_46 {dimension_numbers = #tpu.dot_dimension_numbers<[1], [0], [0], [1], [0, 0, 1, 1], [], []>} : vector<16x32xbf16>, vector<32x32xbf16>, vector<16x32xf32> -> vector<16x32xf32>
    %c2_47 = arith.constant 2 : index
    %c0_48 = arith.constant 0 : index
    %c0_49 = arith.constant 0 : index
    %73 = vector.load %arg6[%c2_47, %c0_48, %c0_49] : memref<3x1x32xf32, #tpu.memory_space<vmem>>, vector<1x1x32xf32>
    %74 = vector.shape_cast %73 : vector<1x1x32xf32> to vector<1x32xf32>
    %75 = vector.broadcast %74 : vector<1x32xf32> to vector<16x32xf32>
    %76 = arith.addf %72, %75 : vector<16x32xf32>
    %c2_50 = arith.constant 2 : index
    %c0_51 = arith.constant 0 : index
    %c0_52 = arith.constant 0 : index
    %77 = vector.load %arg7[%c2_50, %c0_51, %c0_52] : memref<3x32x32xbf16, #tpu.memory_space<vmem>>, vector<1x32x32xbf16>
    %78 = vector.shape_cast %77 : vector<1x32x32xbf16> to vector<32x32xbf16>
    %cst_53 = arith.constant dense<0.000000e+00> : vector<16x32xf32>
    %79 = tpu.matmul %69, %78, %cst_53 {dimension_numbers = #tpu.dot_dimension_numbers<[1], [0], [0], [1], [0, 0, 1, 1], [], []>} : vector<16x32xbf16>, vector<32x32xbf16>, vector<16x32xf32> -> vector<16x32xf32>
    %c2_54 = arith.constant 2 : index
    %c0_55 = arith.constant 0 : index
    %c0_56 = arith.constant 0 : index
    %80 = vector.load %arg8[%c2_54, %c0_55, %c0_56] : memref<3x1x32xf32, #tpu.memory_space<vmem>>, vector<1x1x32xf32>
    %81 = vector.shape_cast %80 : vector<1x1x32xf32> to vector<1x32xf32>
    %82 = vector.broadcast %81 : vector<1x32xf32> to vector<16x32xf32>
    %83 = arith.addf %79, %82 : vector<16x32xf32>
    %84 = arith.truncf %83 : vector<16x32xf32> to vector<16x32xbf16>
    %cst_57 = arith.constant dense<0.000000e+00> : vector<16x32xf32>
    %85 = tpu.matmul %1, %84, %cst_57 {dimension_numbers = #tpu.dot_dimension_numbers<[1], [0], [0], [1], [0, 0, 1, 1], [], []>} : vector<16x16xbf16>, vector<16x32xbf16>, vector<16x32xf32> -> vector<16x32xf32>
    %86 = arith.addf %76, %85 : vector<16x32xf32>
    %87 = arith.mulf %86, %86 : vector<16x32xf32>
    %88 = arith.mulf %86, %87 : vector<16x32xf32>
    %cst_58 = arith.constant 4.471500e-02 : f32
    %89 = vector.broadcast %cst_58 : f32 to vector<16x32xf32>
    %90 = arith.mulf %89, %88 : vector<16x32xf32>
    %91 = arith.addf %86, %90 : vector<16x32xf32>
    %cst_59 = arith.constant 0.797884583 : f32
    %92 = vector.broadcast %cst_59 : f32 to vector<16x32xf32>
    %93 = arith.mulf %92, %91 : vector<16x32xf32>
    %94 = math.tanh %93 : vector<16x32xf32>
    %cst_60 = arith.constant 1.000000e+00 : f32
    %95 = vector.broadcast %cst_60 : f32 to vector<16x32xf32>
    %96 = arith.addf %95, %94 : vector<16x32xf32>
    %cst_61 = arith.constant 5.000000e-01 : f32
    %97 = vector.broadcast %cst_61 : f32 to vector<16x32xf32>
    %98 = arith.mulf %97, %96 : vector<16x32xf32>
    %99 = arith.mulf %86, %98 : vector<16x32xf32>
    %100 = arith.truncf %99 : vector<16x32xf32> to vector<16x32xbf16>
    %c0_62 = arith.constant 0 : index
    %c0_63 = arith.constant 0 : index
    %101 = vector.load %arg9[%c0_62, %c0_63] : memref<32x128xbf16, #tpu.memory_space<vmem>>, vector<32x128xbf16>
    %cst_64 = arith.constant dense<0.000000e+00> : vector<16x128xf32>
    %102 = tpu.matmul %100, %101, %cst_64 {dimension_numbers = #tpu.dot_dimension_numbers<[1], [0], [0], [1], [0, 0, 1, 1], [], []>} : vector<16x32xbf16>, vector<32x128xbf16>, vector<16x128xf32> -> vector<16x128xf32>
    %c0_65 = arith.constant 0 : index
    %c0_66 = arith.constant 0 : index
    %103 = vector.load %arg10[%c0_65, %c0_66] : memref<1x128xf32, #tpu.memory_space<vmem>>, vector<1x128xf32>
    %104 = vector.broadcast %103 : vector<1x128xf32> to vector<16x128xf32>
    %105 = arith.addf %102, %104 : vector<16x128xf32>
    %c0_67 = arith.constant 0 : index
    %c0_68 = arith.constant 0 : index
    %106 = vector.load %arg17[%c0_67, %c0_68] : memref<16x128xf32, #tpu.memory_space<vmem>>, vector<16x128xf32>
    tpu.vector_store %arg17[%c0_67, %c0_68], %105 {strides = array<i32>} : memref<16x128xf32, #tpu.memory_space<vmem>>, vector<16x128xf32>,
    %107 = vector.shape_cast %99 : vector<16x32xf32> to vector<2x8x32xf32>
    %cst_69 = arith.constant dense<0.000000e+00> : vector<2x32xf32>
    %108 = vector.multi_reduction <add>, %107, %cst_69 [1] : vector<2x8x32xf32> to vector<2x32xf32>
    %cst_70 = arith.constant 1.250000e-01 : f32
    %109 = vector.broadcast %cst_70 : f32 to vector<2x32xf32>
    %110 = arith.mulf %108, %109 : vector<2x32xf32>
    %cst_71 = arith.constant dense<0xFF800000> : vector<2x32xf32>
    %111 = vector.multi_reduction <maximumf>, %107, %cst_71 [1] : vector<2x8x32xf32> to vector<2x32xf32>
    %112 = vector.shape_cast %110 : vector<2x32xf32> to vector<2x1x32xf32>
    %113 = vector.broadcast %112 : vector<2x1x32xf32> to vector<2x8x32xf32>
    %114 = arith.subf %107, %113 : vector<2x8x32xf32>
    %115 = arith.mulf %114, %114 : vector<2x8x32xf32>
    %cst_72 = arith.constant dense<0.000000e+00> : vector<2x32xf32>
    %116 = vector.multi_reduction <add>, %115, %cst_72 [1] : vector<2x8x32xf32> to vector<2x32xf32>
    %cst_73 = arith.constant 0.142857149 : f32
    %117 = vector.broadcast %cst_73 : f32 to vector<2x32xf32>
    %118 = arith.mulf %116, %117 : vector<2x32xf32>
    %119 = math.sqrt %118 : vector<2x32xf32>
    %120 = arith.truncf %110 : vector<2x32xf32> to vector<2x32xbf16>
    %c0_74 = arith.constant 0 : index
    %c0_75 = arith.constant 0 : index
    %c0_76 = arith.constant 0 : index
    %121 = vector.load %arg11[%c0_74, %c0_75, %c0_76] : memref<4x32x32xbf16, #tpu.memory_space<vmem>>, vector<1x32x32xbf16>
    %122 = vector.shape_cast %121 : vector<1x32x32xbf16> to vector<32x32xbf16>
    %cst_77 = arith.constant dense<0.000000e+00> : vector<2x32xf32>
    %123 = tpu.matmul %120, %122, %cst_77 {dimension_numbers = #tpu.dot_dimension_numbers<[1], [0], [0], [1], [0, 0, 1, 1], [], []>} : vector<2x32xbf16>, vector<32x32xbf16>, vector<2x32xf32> -> vector<2x32xf32>
    %124 = arith.truncf %111 : vector<2x32xf32> to vector<2x32xbf16>
    %c1_78 = arith.constant 1 : index
    %c0_79 = arith.constant 0 : index
    %c0_80 = arith.constant 0 : index
    %125 = vector.load %arg11[%c1_78, %c0_79, %c0_80] : memref<4x32x32xbf16, #tpu.memory_space<vmem>>, vector<1x32x32xbf16>
    %126 = vector.shape_cast %125 : vector<1x32x32xbf16> to vector<32x32xbf16>
    %cst_81 = arith.constant dense<0.000000e+00> : vector<2x32xf32>
    %127 = tpu.matmul %124, %126, %cst_81 {dimension_numbers = #tpu.dot_dimension_numbers<[1], [0], [0], [1], [0, 0, 1, 1], [], []>} : vector<2x32xbf16>, vector<32x32xbf16>, vector<2x32xf32> -> vector<2x32xf32>
    %128 = arith.addf %123, %127 : vector<2x32xf32>
    %129 = arith.truncf %108 : vector<2x32xf32> to vector<2x32xbf16>
    %c2_82 = arith.constant 2 : index
    %c0_83 = arith.constant 0 : index
    %c0_84 = arith.constant 0 : index
    %130 = vector.load %arg11[%c2_82, %c0_83, %c0_84] : memref<4x32x32xbf16, #tpu.memory_space<vmem>>, vector<1x32x32xbf16>
    %131 = vector.shape_cast %130 : vector<1x32x32xbf16> to vector<32x32xbf16>
    %cst_85 = arith.constant dense<0.000000e+00> : vector<2x32xf32>
    %132 = tpu.matmul %129, %131, %cst_85 {dimension_numbers = #tpu.dot_dimension_numbers<[1], [0], [0], [1], [0, 0, 1, 1], [], []>} : vector<2x32xbf16>, vector<32x32xbf16>, vector<2x32xf32> -> vector<2x32xf32>
    %133 = arith.addf %128, %132 : vector<2x32xf32>
    %134 = arith.truncf %119 : vector<2x32xf32> to vector<2x32xbf16>
    %c3 = arith.constant 3 : index
    %c0_86 = arith.constant 0 : index
    %c0_87 = arith.constant 0 : index
    %135 = vector.load %arg11[%c3, %c0_86, %c0_87] : memref<4x32x32xbf16, #tpu.memory_space<vmem>>, vector<1x32x32xbf16>
    %136 = vector.shape_cast %135 : vector<1x32x32xbf16> to vector<32x32xbf16>
    %cst_88 = arith.constant dense<0.000000e+00> : vector<2x32xf32>
    %137 = tpu.matmul %134, %136, %cst_88 {dimension_numbers = #tpu.dot_dimension_numbers<[1], [0], [0], [1], [0, 0, 1, 1], [], []>} : vector<2x32xbf16>, vector<32x32xbf16>, vector<2x32xf32> -> vector<2x32xf32>
    %138 = arith.addf %133, %137 : vector<2x32xf32>
    %c0_89 = arith.constant 0 : index
    %c0_90 = arith.constant 0 : index
    %139 = vector.load %arg12[%c0_89, %c0_90] : memref<1x32xf32, #tpu.memory_space<vmem>>, vector<1x32xf32>
    %140 = vector.broadcast %139 : vector<1x32xf32> to vector<2x32xf32>
    %141 = arith.addf %138, %140 : vector<2x32xf32>
    %142 = arith.mulf %141, %141 : vector<2x32xf32>
    %143 = arith.mulf %141, %142 : vector<2x32xf32>
    %cst_91 = arith.constant 4.471500e-02 : f32
    %144 = vector.broadcast %cst_91 : f32 to vector<2x32xf32>
    %145 = arith.mulf %144, %143 : vector<2x32xf32>
    %146 = arith.addf %141, %145 : vector<2x32xf32>
    %cst_92 = arith.constant 0.797884583 : f32
    %147 = vector.broadcast %cst_92 : f32 to vector<2x32xf32>
    %148 = arith.mulf %147, %146 : vector<2x32xf32>
    %149 = math.tanh %148 : vector<2x32xf32>
    %cst_93 = arith.constant 1.000000e+00 : f32
    %150 = vector.broadcast %cst_93 : f32 to vector<2x32xf32>
    %151 = arith.addf %150, %149 : vector<2x32xf32>
    %cst_94 = arith.constant 5.000000e-01 : f32
    %152 = vector.broadcast %cst_94 : f32 to vector<2x32xf32>
    %153 = arith.mulf %152, %151 : vector<2x32xf32>
    %154 = arith.mulf %141, %153 : vector<2x32xf32>
    %155 = arith.truncf %154 : vector<2x32xf32> to vector<2x32xbf16>
    %c0_95 = arith.constant 0 : index
    %c0_96 = arith.constant 0 : index
    %156 = vector.load %arg13[%c0_95, %c0_96] : memref<32x32xbf16, #tpu.memory_space<vmem>>, vector<32x32xbf16>
    %cst_97 = arith.constant dense<0.000000e+00> : vector<2x32xf32>
    %157 = tpu.matmul %155, %156, %cst_97 {dimension_numbers = #tpu.dot_dimension_numbers<[1], [0], [0], [1], [0, 0, 1, 1], [], []>} : vector<2x32xbf16>, vector<32x32xbf16>, vector<2x32xf32> -> vector<2x32xf32>
    %c0_98 = arith.constant 0 : index
    %c0_99 = arith.constant 0 : index
    %158 = vector.load %arg14[%c0_98, %c0_99] : memref<1x32xf32, #tpu.memory_space<vmem>>, vector<1x32xf32>
    %159 = vector.broadcast %158 : vector<1x32xf32> to vector<2x32xf32>
    %160 = arith.addf %157, %159 : vector<2x32xf32>
    %161 = arith.mulf %160, %160 : vector<2x32xf32>
    %162 = arith.mulf %160, %161 : vector<2x32xf32>
    %cst_100 = arith.constant 4.471500e-02 : f32
    %163 = vector.broadcast %cst_100 : f32 to vector<2x32xf32>
    %164 = arith.mulf %163, %162 : vector<2x32xf32>
    %165 = arith.addf %160, %164 : vector<2x32xf32>
    %cst_101 = arith.constant 0.797884583 : f32
    %166 = vector.broadcast %cst_101 : f32 to vector<2x32xf32>
    %167 = arith.mulf %166, %165 : vector<2x32xf32>
    %168 = math.tanh %167 : vector<2x32xf32>
    %cst_102 = arith.constant 1.000000e+00 : f32
    %169 = vector.broadcast %cst_102 : f32 to vector<2x32xf32>
    %170 = arith.addf %169, %168 : vector<2x32xf32>
    %cst_103 = arith.constant 5.000000e-01 : f32
    %171 = vector.broadcast %cst_103 : f32 to vector<2x32xf32>
    %172 = arith.mulf %171, %170 : vector<2x32xf32>
    %173 = arith.mulf %160, %172 : vector<2x32xf32>
    %174 = arith.truncf %173 : vector<2x32xf32> to vector<2x32xbf16>
    %c0_104 = arith.constant 0 : index
    %c0_105 = arith.constant 0 : index
    %175 = vector.load %arg15[%c0_104, %c0_105] : memref<32x128xbf16, #tpu.memory_space<vmem>>, vector<32x128xbf16>
    %cst_106 = arith.constant dense<0.000000e+00> : vector<2x128xf32>
    %176 = tpu.matmul %174, %175, %cst_106 {dimension_numbers = #tpu.dot_dimension_numbers<[1], [0], [0], [1], [0, 0, 1, 1], [], []>} : vector<2x32xbf16>, vector<32x128xbf16>, vector<2x128xf32> -> vector<2x128xf32>
    %c0_107 = arith.constant 0 : index
    %c0_108 = arith.constant 0 : index
    %177 = vector.load %arg16[%c0_107, %c0_108] : memref<1x128xf32, #tpu.memory_space<vmem>>, vector<1x128xf32>
    %178 = vector.broadcast %177 : vector<1x128xf32> to vector<2x128xf32>
    %179 = arith.addf %176, %178 : vector<2x128xf32>
    %c0_109 = arith.constant 0 : index
    %c0_110 = arith.constant 0 : index
    %c0_111 = arith.constant 0 : index
    %180 = vector.load %arg18[%c0_109, %c0_110, %c0_111] : memref<1x2x128xf32, #tpu.memory_space<vmem>>, vector<1x2x128xf32>
    %181 = vector.shape_cast %180 : vector<1x2x128xf32> to vector<2x128xf32>
    %182 = vector.shape_cast %179 : vector<2x128xf32> to vector<1x2x128xf32>
    tpu.vector_store %arg18[%c0_109, %c0_110, %c0_111], %182 {strides = array<i32>} : memref<1x2x128xf32, #tpu.memory_space<vmem>>, vector<1x2x128xf32>,
    return
  }
  func.func @transform_0(%arg0: i32) -> (i32, i32) {
    %c0_i32 = arith.constant 0 : i32
    %c0_i32_0 = arith.constant 0 : i32
    return %arg0, %c0_i32 : i32, i32
  }
  func.func @transform_1(%arg0: i32) -> (i32, i32) {
    %c0_i32 = arith.constant 0 : i32
    %c0_i32_0 = arith.constant 0 : i32
    return %arg0, %c0_i32 : i32, i32
  }
  func.func @transform_2(%arg0: i32) -> (i32, i32) {
    %c0_i32 = arith.constant 0 : i32
    %c0_i32_0 = arith.constant 0 : i32
    %c0_i32_1 = arith.constant 0 : i32
    return %c0_i32, %c0_i32_0 : i32, i32
  }
  func.func @transform_3(%arg0: i32) -> (i32, i32) {
    %c0_i32 = arith.constant 0 : i32
    %c0_i32_0 = arith.constant 0 : i32
    %c0_i32_1 = arith.constant 0 : i32
    return %c0_i32, %c0_i32_0 : i32, i32
  }
  func.func @transform_4(%arg0: i32) -> (i32, i32, i32) {
    %c0_i32 = arith.constant 0 : i32
    %c0_i32_0 = arith.constant 0 : i32
    %c0_i32_1 = arith.constant 0 : i32
    %c0_i32_2 = arith.constant 0 : i32
    return %c0_i32, %c0_i32_0, %c0_i32_1 : i32, i32, i32
  }
  func.func @transform_5(%arg0: i32) -> (i32, i32, i32) {
    %c0_i32 = arith.constant 0 : i32
    %c0_i32_0 = arith.constant 0 : i32
    %c0_i32_1 = arith.constant 0 : i32
    %c0_i32_2 = arith.constant 0 : i32
    return %c0_i32, %c0_i32_0, %c0_i32_1 : i32, i32, i32
  }
  func.func @transform_6(%arg0: i32) -> (i32, i32, i32) {
    %c0_i32 = arith.constant 0 : i32
    %c0_i32_0 = arith.constant 0 : i32
    %c0_i32_1 = arith.constant 0 : i32
    %c0_i32_2 = arith.constant 0 : i32
    return %c0_i32, %c0_i32_0, %c0_i32_1 : i32, i32, i32
  }
  func.func @transform_7(%arg0: i32) -> (i32, i32, i32) {
    %c0_i32 = arith.constant 0 : i32
    %c0_i32_0 = arith.constant 0 : i32
    %c0_i32_1 = arith.constant 0 : i32
    %c0_i32_2 = arith.constant 0 : i32
    return %c0_i32, %c0_i32_0, %c0_i32_1 : i32, i32, i32
  }
  func.func @transform_8(%arg0: i32) -> (i32, i32) {
    %c0_i32 = arith.constant 0 : i32
    %c0_i32_0 = arith.constant 0 : i32
    %c0_i32_1 = arith.constant 0 : i32
    return %c0_i32, %c0_i32_0 : i32, i32
  }
  func.func @transform_9(%arg0: i32) -> (i32, i32) {
    %c0_i32 = arith.constant 0 : i32
    %c0_i32_0 = arith.constant 0 : i32
    %c0_i32_1 = arith.constant 0 : i32
    return %c0_i32, %c0_i32_0 : i32, i32
  }
  func.func @transform_10(%arg0: i32) -> (i32, i32, i32) {
    %c0_i32 = arith.constant 0 : i32
    %c0_i32_0 = arith.constant 0 : i32
    %c0_i32_1 = arith.constant 0 : i32
    %c0_i32_2 = arith.constant 0 : i32
    return %c0_i32, %c0_i32_0, %c0_i32_1 : i32, i32, i32
  }
  func.func @transform_11(%arg0: i32) -> (i32, i32) {
    %c0_i32 = arith.constant 0 : i32
    %c0_i32_0 = arith.constant 0 : i32
    %c0_i32_1 = arith.constant 0 : i32
    return %c0_i32, %c0_i32_0 : i32, i32
  }
  func.func @transform_12(%arg0: i32) -> (i32, i32) {
    %c0_i32 = arith.constant 0 : i32
    %c0_i32_0 = arith.constant 0 : i32
    %c0_i32_1 = arith.constant 0 : i32
    return %c0_i32, %c0_i32_0 : i32, i32
  }
  func.func @transform_13(%arg0: i32) -> (i32, i32) {
    %c0_i32 = arith.constant 0 : i32
    %c0_i32_0 = arith.constant 0 : i32
    %c0_i32_1 = arith.constant 0 : i32
    return %c0_i32, %c0_i32_0 : i32, i32
  }
  func.func @transform_14(%arg0: i32) -> (i32, i32) {
    %c0_i32 = arith.constant 0 : i32
    %c0_i32_0 = arith.constant 0 : i32
    %c0_i32_1 = arith.constant 0 : i32
    return %c0_i32, %c0_i32_0 : i32, i32
  }
  func.func @transform_15(%arg0: i32) -> (i32, i32) {
    %c0_i32 = arith.constant 0 : i32
    %c0_i32_0 = arith.constant 0 : i32
    %c0_i32_1 = arith.constant 0 : i32
    return %c0_i32, %c0_i32_0 : i32, i32
  }
  func.func @transform_16(%arg0: i32) -> (i32, i32) {
    %c0_i32 = arith.constant 0 : i32
    %c0_i32_0 = arith.constant 0 : i32
    return %arg0, %c0_i32 : i32, i32
  }
  func.func @transform_17(%arg0: i32) -> (i32, i32, i32) {
    %c0_i32 = arith.constant 0 : i32
    %c0_i32_0 = arith.constant 0 : i32
    %c0_i32_1 = arith.constant 0 : i32
    return %arg0, %c0_i32, %c0_i32_0 : i32, i32, i32
  }
}

</mosaic_0001>

<llo_original>
// kernel: tpu_custom_call.1
$region0: #{tpu_custom_call.1}
  #allocation0 [shape = 'u32[]', space=smem, size = 0x4, offset = 0x4, fixed_abs, tag = 'smem constant byte address 0x4 - core index']
  #allocation1 [shape = 'u32[144,128]{1,0:T(1,128)}', space=vmem, size = 0x12000, scoped, tag = 'internal scratch']
  %s0 = inlined_call_operand.vmem [shape: bf16[16,4], index: 0, kind: input, shape index: {}]
  %s1 = inlined_call_operand.hbm [shape: bf16[16,16], index: 1, kind: input, shape index: {}]
  %s2 = inlined_call_operand.hbm [shape: bf16[4,32], index: 2, kind: input, shape index: {}]
  %s3 = inlined_call_operand.vmem [shape: f32[1,32], index: 3, kind: input, shape index: {}]
  %s4 = inlined_call_operand.hbm [shape: bf16[3,32,32], index: 4, kind: input, shape index: {}]
  %s5 = inlined_call_operand.hbm [shape: f32[3,1,32], index: 5, kind: input, shape index: {}]
  %s6 = inlined_call_operand.hbm [shape: bf16[3,32,32], index: 6, kind: input, shape index: {}]
  %s7 = inlined_call_operand.hbm [shape: f32[3,1,32], index: 7, kind: input, shape index: {}]
  %s8 = inlined_call_operand.vmem [shape: bf16[32,128], index: 8, kind: input, shape index: {}]
  %s9 = inlined_call_operand.hbm [shape: f32[1,128], index: 9, kind: input, shape index: {}]
  %s10 = inlined_call_operand.hbm [shape: bf16[4,32,32], index: 10, kind: input, shape index: {}]
  %s11 = inlined_call_operand.hbm [shape: f32[1,32], index: 11, kind: input, shape index: {}]
  %s12 = inlined_call_operand.hbm [shape: bf16[32,32], index: 12, kind: input, shape index: {}]
  %s13 = inlined_call_operand.hbm [shape: f32[1,32], index: 13, kind: input, shape index: {}]
  %s14 = inlined_call_operand.vmem [shape: bf16[32,128], index: 14, kind: input, shape index: {}]
  %s15 = inlined_call_operand.vmem [shape: f32[1,128], index: 15, kind: input, shape index: {}]
  %s16 = inlined_call_operand.hbm [shape: f32[16,128], index: 16, kind: output, shape index: {0}]
  %s17 = inlined_call_operand.hbm [shape: f32[1,2,128], index: 17, kind: output, shape index: {1}]
  %18 = xla_tuple %s16, %s17
  %s19 = sld [smem:[#allocation0]]
  $region126: #{tpu_custom_call.1} parent=0
    _
  %s21 = ssub.s32 1, %s19
  %s22 = scalar_select 0, %s21, %s19
  $region1: #{tpu_custom_call.1} parent=0
    #allocation2 [shape = 'u8[4096]{0}', space=vmem, size = 0x1000, scoped, tag = 'input window, operand 1, single buffered']
    #allocation3 [shape = 's32[1]{0}', space=sflag, size = 0x4, scoped, tag = 'scoped memory for tpu_custom_call.1']
    #allocation4 [shape = 's32[1]{0}', space=sflag, size = 0x4, scoped, tag = 'scoped memory for tpu_custom_call.1']
    #allocation5 [shape = 'u8[1024]{0}', space=vmem, size = 0x400, scoped, tag = 'input window, operand 2, single buffered']
    #allocation6 [shape = 's32[1]{0}', space=sflag, size = 0x4, scoped, tag = 'scoped memory for tpu_custom_call.1']
    #allocation7 [shape = 'u8[24576]{0}', space=vmem, size = 0x6000, scoped, tag = 'input window, operand 4, single buffered']
    #allocation8 [shape = 'u8[1536]{0}', space=vmem, size = 0x800, scoped, tag = 'input window, operand 5, single buffered']
    #allocation9 [shape = 's32[1]{0}', space=sflag, size = 0x4, scoped, tag = 'scoped memory for tpu_custom_call.1']
    #allocation10 [shape = 'u8[24576]{0}', space=vmem, size = 0x6000, scoped, tag = 'input window, operand 6, single buffered']
    #allocation11 [shape = 'u8[1536]{0}', space=vmem, size = 0x800, scoped, tag = 'input window, operand 7, single buffered']
    #allocation12 [shape = 's32[1]{0}', space=sflag, size = 0x4, scoped, tag = 'scoped memory for tpu_custom_call.1']
    #allocation13 [shape = 'u8[512]{0}', space=vmem, size = 0x400, scoped, tag = 'input window, operand 9, single buffered']
    #allocation14 [shape = 'u8[32768]{0}', space=vmem, size = 0x8000, scoped, tag = 'input window, operand 10, single buffered']
    #allocation15 [shape = 's32[1]{0}', space=sflag, size = 0x4, scoped, tag = 'scoped memory for tpu_custom_call.1']
    #allocation16 [shape = 'u8[512]{0}', space=vmem, size = 0x400, scoped, tag = 'input window, operand 11, single buffered']
    #allocation17 [shape = 'u8[8192]{0}', space=vmem, size = 0x2000, scoped, tag = 'input window, operand 12, single buffered']
    #allocation18 [shape = 's32[1]{0}', space=sflag, size = 0x4, scoped, tag = 'scoped memory for tpu_custom_call.1']
    #allocation19 [shape = 'u8[512]{0}', space=vmem, size = 0x400, scoped, tag = 'input window, operand 13, single buffered']
    #allocation20 [shape = 'u8[8192]{0}', space=vmem, size = 0x2000, scoped, tag = 'output window, operand 0, single buffered']
    #allocation21 [shape = 'u8[1024]{0}', space=vmem, size = 0x400, scoped, tag = 'output window, operand 1, single buffered']
    #allocation22 [shape = 's32[1]{0}', space=sflag, size = 0x4, scoped, tag = 'scoped memory for tpu_custom_call.1']
    %23 = vsyncpa [#allocation3], 0
    %24 = vsyncpa [#allocation6], 0
    %25 = vsyncpa [#allocation9], 0
    %26 = vsyncpa [#allocation12], 0
    %27 = vsyncpa [#allocation15], 0
    %28 = vsyncpa [#allocation18], 0
    %29 = vsyncpa [#allocation4], 0
    %30 = vsyncpa [#allocation22], 0
    // Predicated region
    $region2: #{tpu_custom_call.1} parent=1 // pred_check
      _
    $region3: #{tpu_custom_call.1} parent=1 // pred_check_branch
      %32 = sbr.rel (0) target = $region5
    $region4: #{tpu_custom_call.1} parent=1 // pred_region
      _
    $region5: #{tpu_custom_call.1} parent=1 // pred_fallthru
      _
    // Predicated region
    $region6: #{tpu_custom_call.1} parent=1 // pred_check
      _
    $region7: #{tpu_custom_call.1} parent=1 // pred_check_branch
      %34 = sbr.rel (0) target = $region9
    $region8: #{tpu_custom_call.1} parent=1 // pred_region
      %s36 = ssub.s32 128, 128
      %37 = vsyncadd [#allocation3], %s36
      %s38 = sshll.u32 [#allocation2], 4
      %s39 = int_to_ptr.vmem [resolvable:$true] %s38
      %44 = dma.hbm_to_vmem [thread:$0]  %s1, 128, %s39, [#allocation3], 64, 64, 4
    $region9: #{tpu_custom_call.1} parent=1 // pred_fallthru
      _
    // Predicated region
    $region10: #{tpu_custom_call.1} parent=1 // pred_check
      _
    $region11: #{tpu_custom_call.1} parent=1 // pred_check_branch
      %46 = sbr.rel (0) target = $region13
    $region12: #{tpu_custom_call.1} parent=1 // pred_region
      %s48 = ssub.s32 32, 32
      %49 = vsyncadd [#allocation6], %s48
      %s51 = sshll.u32 [#allocation5], 4
      %s52 = int_to_ptr.vmem [resolvable:$true] %s51
      %54 = dma.hbm_to_vmem [thread:$0]  %s2, 32, %s52, [#allocation6]
    $region13: #{tpu_custom_call.1} parent=1 // pred_fallthru
      _
    // Predicated region
    $region14: #{tpu_custom_call.1} parent=1 // pred_check
      _
    $region15: #{tpu_custom_call.1} parent=1 // pred_check_branch
      %56 = sbr.rel (0) target = $region17
    $region16: #{tpu_custom_call.1} parent=1 // pred_region
      _
    $region17: #{tpu_custom_call.1} parent=1 // pred_fallthru
      _
    // Predicated region
    $region18: #{tpu_custom_call.1} parent=1 // pred_check
      _
    $region19: #{tpu_custom_call.1} parent=1 // pred_check_branch
      %58 = sbr.rel (0) target = $region21
    $region20: #{tpu_custom_call.1} parent=1 // pred_region
      %s60 = ssub.s32 768, 768
      %61 = vsyncadd [#allocation6], %s60
      %s62 = sshll.u32 [#allocation7], 4
      %s63 = int_to_ptr.vmem [resolvable:$true] %s62
      %68 = dma.hbm_to_vmem [thread:$0]  %s4, 768, %s63, [#allocation6], 64, 64, 4
    $region21: #{tpu_custom_call.1} parent=1 // pred_fallthru
      _
    // Predicated region
    $region22: #{tpu_custom_call.1} parent=1 // pred_check
      _
    $region23: #{tpu_custom_call.1} parent=1 // pred_check_branch
      %70 = sbr.rel (0) target = $region25
    $region24: #{tpu_custom_call.1} parent=1 // pred_region
      %s72 = ssub.s32 48, 48
      %73 = vsyncadd [#allocation9], %s72
      %s74 = sshll.u32 [#allocation8], 4
      %s75 = int_to_ptr.vmem [resolvable:$true] %s74
      %80 = dma.hbm_to_vmem [thread:$0]  %s5, 48, %s75, [#allocation9], 16, 16, 1
    $region25: #{tpu_custom_call.1} parent=1 // pred_fallthru
      _
    // Predicated region
    $region26: #{tpu_custom_call.1} parent=1 // pred_check
      _
    $region27: #{tpu_custom_call.1} parent=1 // pred_check_branch
      %82 = sbr.rel (0) target = $region29
    $region28: #{tpu_custom_call.1} parent=1 // pred_region
      %s84 = ssub.s32 768, 768
      %85 = vsyncadd [#allocation9], %s84
      %s86 = sshll.u32 [#allocation10], 4
      %s87 = int_to_ptr.vmem [resolvable:$true] %s86
      %92 = dma.hbm_to_vmem [thread:$0]  %s6, 768, %s87, [#allocation9], 64, 64, 4
    $region29: #{tpu_custom_call.1} parent=1 // pred_fallthru
      _
    // Predicated region
    $region30: #{tpu_custom_call.1} parent=1 // pred_check
      _
    $region31: #{tpu_custom_call.1} parent=1 // pred_check_branch
      %94 = sbr.rel (0) target = $region33
    $region32: #{tpu_custom_call.1} parent=1 // pred_region
      %s96 = ssub.s32 48, 48
      %97 = vsyncadd [#allocation12], %s96
      %s98 = sshll.u32 [#allocation11], 4
      %s99 = int_to_ptr.vmem [resolvable:$true] %s98
      %104 = dma.hbm_to_vmem [thread:$0]  %s7, 48, %s99, [#allocation12], 16, 16, 1
    $region33: #{tpu_custom_call.1} parent=1 // pred_fallthru
      _
    // Predicated region
    $region34: #{tpu_custom_call.1} parent=1 // pred_check
      _
    $region35: #{tpu_custom_call.1} parent=1 // pred_check_branch
      %106 = sbr.rel (0) target = $region37
    $region36: #{tpu_custom_call.1} parent=1 // pred_region
      _
    $region37: #{tpu_custom_call.1} parent=1 // pred_fallthru
      _
    // Predicated region
    $region38: #{tpu_custom_call.1} parent=1 // pred_check
      _
    $region39: #{tpu_custom_call.1} parent=1 // pred_check_branch
      %108 = sbr.rel (0) target = $region41
    $region40: #{tpu_custom_call.1} parent=1 // pred_region
      %s110 = ssub.s32 16, 16
      %111 = vsyncadd [#allocation12], %s110
      %s113 = sshll.u32 [#allocation13], 4
      %s114 = int_to_ptr.vmem [resolvable:$true] %s113
      %116 = dma.hbm_to_vmem [thread:$0]  %s9, 16, %s114, [#allocation12]
    $region41: #{tpu_custom_call.1} parent=1 // pred_fallthru
      _
    // Predicated region
    $region42: #{tpu_custom_call.1} parent=1 // pred_check
      _
    $region43: #{tpu_custom_call.1} parent=1 // pred_check_branch
      %118 = sbr.rel (0) target = $region45
    $region44: #{tpu_custom_call.1} parent=1 // pred_region
      %s120 = ssub.s32 1024, 1024
      %121 = vsyncadd [#allocation15], %s120
      %s122 = sshll.u32 [#allocation14], 4
      %s123 = int_to_ptr.vmem [resolvable:$true] %s122
      %128 = dma.hbm_to_vmem [thread:$0]  %s10, 1024, %s123, [#allocation15], 64, 64, 4
    $region45: #{tpu_custom_call.1} parent=1 // pred_fallthru
      _
    // Predicated region
    $region46: #{tpu_custom_call.1} parent=1 // pred_check
      _
    $region47: #{tpu_custom_call.1} parent=1 // pred_check_branch
      %130 = sbr.rel (0) target = $region49
    $region48: #{tpu_custom_call.1} parent=1 // pred_region
      %s132 = ssub.s32 16, 16
      %133 = vsyncadd [#allocation15], %s132
      %s135 = sshll.u32 [#allocation16], 4
      %s136 = int_to_ptr.vmem [resolvable:$true] %s135
      %138 = dma.hbm_to_vmem [thread:$0]  %s11, 16, %s136, [#allocation15]
    $region49: #{tpu_custom_call.1} parent=1 // pred_fallthru
      _
    // Predicated region
    $region50: #{tpu_custom_call.1} parent=1 // pred_check
      _
    $region51: #{tpu_custom_call.1} parent=1 // pred_check_branch
      %140 = sbr.rel (0) target = $region53
    $region52: #{tpu_custom_call.1} parent=1 // pred_region
      %s142 = ssub.s32 256, 256
      %143 = vsyncadd [#allocation18], %s142
      %s144 = sshll.u32 [#allocation17], 4
      %s145 = int_to_ptr.vmem [resolvable:$true] %s144
      %150 = dma.hbm_to_vmem [thread:$0]  %s12, 256, %s145, [#allocation18], 64, 64, 4
    $region53: #{tpu_custom_call.1} parent=1 // pred_fallthru
      _
    // Predicated region
    $region54: #{tpu_custom_call.1} parent=1 // pred_check
      _
    $region55: #{tpu_custom_call.1} parent=1 // pred_check_branch
      %152 = sbr.rel (0) target = $region57
    $region56: #{tpu_custom_call.1} parent=1 // pred_region
      %s154 = ssub.s32 16, 16
      %155 = vsyncadd [#allocation18], %s154
      %s157 = sshll.u32 [#allocation19], 4
      %s158 = int_to_ptr.vmem [resolvable:$true] %s157
      %160 = dma.hbm_to_vmem [thread:$0]  %s13, 16, %s158, [#allocation18]
    $region57: #{tpu_custom_call.1} parent=1 // pred_fallthru
      _
    // Predicated region
    $region58: #{tpu_custom_call.1} parent=1 // pred_check
      _
    $region59: #{tpu_custom_call.1} parent=1 // pred_check_branch
      %162 = sbr.rel (0) target = $region61
    $region60: #{tpu_custom_call.1} parent=1 // pred_region
      _
    $region61: #{tpu_custom_call.1} parent=1 // pred_fallthru
      _
    // Predicated region
    $region62: #{tpu_custom_call.1} parent=1 // pred_check
      _
    $region63: #{tpu_custom_call.1} parent=1 // pred_check_branch
      %164 = sbr.rel (0) target = $region65
    $region64: #{tpu_custom_call.1} parent=1 // pred_region
      _
    $region65: #{tpu_custom_call.1} parent=1 // pred_fallthru
      _
    // Predicated region
    $region66: #{tpu_custom_call.1} parent=1 // pred_check
      _
    $region67: #{tpu_custom_call.1} parent=1 // pred_check_branch
      %166 = sbr.rel (0) target = $region69
    $region68: #{tpu_custom_call.1} parent=1 // pred_region
      %167 = dma.done [#allocation3], 128
    $region69: #{tpu_custom_call.1} parent=1 // pred_fallthru
      _
    // Predicated region
    $region70: #{tpu_custom_call.1} parent=1 // pred_check
      _
    $region71: #{tpu_custom_call.1} parent=1 // pred_check_branch
      %169 = sbr.rel (0) target = $region73
    $region72: #{tpu_custom_call.1} parent=1 // pred_region
      %170 = dma.done [#allocation6], 32
    $region73: #{tpu_custom_call.1} parent=1 // pred_fallthru
      _
    // Predicated region
    $region74: #{tpu_custom_call.1} parent=1 // pred_check
      _
    $region75: #{tpu_custom_call.1} parent=1 // pred_check_branch
      %172 = sbr.rel (0) target = $region77
    $region76: #{tpu_custom_call.1} parent=1 // pred_region
      %173 = dma.done [#allocation6], 768
    $region77: #{tpu_custom_call.1} parent=1 // pred_fallthru
      _
    // Predicated region
    $region78: #{tpu_custom_call.1} parent=1 // pred_check
      _
    $region79: #{tpu_custom_call.1} parent=1 // pred_check_branch
      %175 = sbr.rel (0) target = $region81
    $region80: #{tpu_custom_call.1} parent=1 // pred_region
      %176 = dma.done [#allocation9], 48
    $region81: #{tpu_custom_call.1} parent=1 // pred_fallthru
      _
    // Predicated region
    $region82: #{tpu_custom_call.1} parent=1 // pred_check
      _
    $region83: #{tpu_custom_call.1} parent=1 // pred_check_branch
      %178 = sbr.rel (0) target = $region85
    $region84: #{tpu_custom_call.1} parent=1 // pred_region
      %179 = dma.done [#allocation9], 768
    $region85: #{tpu_custom_call.1} parent=1 // pred_fallthru
      _
    // Predicated region
    $region86: #{tpu_custom_call.1} parent=1 // pred_check
      _
    $region87: #{tpu_custom_call.1} parent=1 // pred_check_branch
      %181 = sbr.rel (0) target = $region89
    $region88: #{tpu_custom_call.1} parent=1 // pred_region
      %182 = dma.done [#allocation12], 48
    $region89: #{tpu_custom_call.1} parent=1 // pred_fallthru
      _
    // Predicated region
    $region90: #{tpu_custom_call.1} parent=1 // pred_check
      _
    $region91: #{tpu_custom_call.1} parent=1 // pred_check_branch
      %184 = sbr.rel (0) target = $region93
    $region92: #{tpu_custom_call.1} parent=1 // pred_region
      %185 = dma.done [#allocation12], 16
    $region93: #{tpu_custom_call.1} parent=1 // pred_fallthru
      _
    // Predicated region
    $region94: #{tpu_custom_call.1} parent=1 // pred_check
      _
    $region95: #{tpu_custom_call.1} parent=1 // pred_check_branch
      %187 = sbr.rel (0) target = $region97
    $region96: #{tpu_custom_call.1} parent=1 // pred_region
      %188 = dma.done [#allocation15], 1024
    $region97: #{tpu_custom_call.1} parent=1 // pred_fallthru
      _
    // Predicated region
    $region98: #{tpu_custom_call.1} parent=1 // pred_check
      _
    $region99: #{tpu_custom_call.1} parent=1 // pred_check_branch
      %190 = sbr.rel (0) target = $region101
    $region100: #{tpu_custom_call.1} parent=1 // pred_region
      %191 = dma.done [#allocation15], 16
    $region101: #{tpu_custom_call.1} parent=1 // pred_fallthru
      _
    // Predicated region
    $region102: #{tpu_custom_call.1} parent=1 // pred_check
      _
    $region103: #{tpu_custom_call.1} parent=1 // pred_check_branch
      %193 = sbr.rel (0) target = $region105
    $region104: #{tpu_custom_call.1} parent=1 // pred_region
      %194 = dma.done [#allocation18], 256
    $region105: #{tpu_custom_call.1} parent=1 // pred_fallthru
      _
    // Predicated region
    $region106: #{tpu_custom_call.1} parent=1 // pred_check
      _
    $region107: #{tpu_custom_call.1} parent=1 // pred_check_branch
      %196 = sbr.rel (0) target = $region109
    $region108: #{tpu_custom_call.1} parent=1 // pred_region
      %197 = dma.done [#allocation18], 16
    $region109: #{tpu_custom_call.1} parent=1 // pred_fallthru
      _
    %v199 = vld [vmem:[%s0] sm:$0xf]
    %v200 = vld [vmem:[%s0 + $0x4] sm:$0xf]
    %v201 = vld [vmem:[#allocation2] sm:$0xf]
    %v202 = vld [vmem:[#allocation2 + $0x4] sm:$0xf]
    %v203 = vld [vmem:[#allocation5] sm:$0x3]
    %v204 = vld [vmem:[%s3] sm:$0x1]
    %v206 = vlaneseq
    %v207 = vshrl.u32 %v206, 7
    %v208 = vsub.s32 0, %v207
    %v209 = vrot.slane %v204, %v208
    %v213 = vunpack.c.l.b16 %v199
    %v214 = vunpack.c.l.b16 %v200
    %v215 = vpack.c.b16 %v214, %v213
    %vm216 = vcmask 31744
    %v218 = vsel %vm216, %v215, 0
    %vm220 = vcmask 1041408
    %v222 = vsel %vm220, %v203, 0
    %224 = vmatprep.subr.bf16.mxu0 0
    %225 = vmatpush1.bf16.msra.mxu0 0
    %226 = vmatprep.subr.bf16.mxu0 0
    %227 = vmatpush1.bf16.msra.mxu0 0
    %228 = vmatprep.subr.bf16.mxu0 0
    %229 = vmatpush1.bf16.msra.mxu0 0
    %230 = vmatprep.subr.bf16.mxu0 0
    %231 = vmatpush1.bf16.msra.mxu0 0
    %232 = vmatprep.subr.bf16.mxu0 0
    %233 = vmatpush1.bf16.msra.mxu0 0
    %234 = vmatprep.subr.bf16.mxu0 0
    %235 = vmatpush1.bf16.msra.mxu0 0
    %236 = vmatprep.subr.bf16.mxu0 0
    %237 = vmatpush1.bf16.msra.mxu0 0
    %238 = vmatprep.subr.bf16.mxu0 0
    %239 = vmatpush1.bf16.msra.mxu0 %v222
    %240 = vmatprep.subr.bf16.mxu0 0
    %241 = vmatpush2.bf16.msra.mxu0 0
    %242 = vmatprep.subr.bf16.mxu0 0
    %243 = vmatpush2.bf16.msra.mxu0 0
    %244 = vmatprep.subr.bf16.mxu0 0
    %245 = vmatpush2.bf16.msra.mxu0 0
    %246 = vmatprep.subr.bf16.mxu0 0
    %247 = vmatpush2.bf16.msra.mxu0 0
    %248 = vmatprep.subr.bf16.mxu0 0
    %249 = vmatpush2.bf16.msra.mxu0 0
    %250 = vmatprep.subr.bf16.mxu0 0
    %251 = vmatpush2.bf16.msra.mxu0 0
    %252 = vmatprep.subr.bf16.mxu0 0
    %253 = vmatpush2.bf16.msra.mxu0 0
    %254 = vmatprep.subr.bf16.mxu0 0
    %255 = vmatpush2.bf16.msra.mxu0 0
    %256 = vmatprep.mubr.bf16.mxu0 0
    %257 = vmatmul.mubr.bf16.gmra.mxu0 %v218
    %v258 = vpop.f32.mrf.mxu0
    %v259 = vadd.f32 %v209, %v258
    %v260 = vpop.f32.mrf.mxu0
    %v261 = vpop.f32.mrf.mxu0
    %v262 = vadd.f32 %v209, %v261
    %v263 = vpop.f32.mrf.mxu0
    %264 = vdwg.mxu0
    %v265 = vpack.c.bf16 %v262, %v259
    %v266 = vld [vmem:[#allocation7] sm:$0xf]
    %v267 = vld [vmem:[#allocation7 + $0x4] sm:$0xf]
    %v268 = vld [vmem:[#allocation7 + $0x8] sm:$0xf]
    %v269 = vld [vmem:[#allocation7 + $0xc] sm:$0xf]
    %v270 = vld [vmem:[#allocation8] sm:$0x1]
    %v272 = vlaneseq
    %v273 = vshrl.u32 %v272, 7
    %v274 = vsub.s32 0, %v273
    %v275 = vrot.slane %v270, %v274
    %v281 = vunpack.c.l.b16 %v266
    %v282 = vunpack.c.l.b16 %v267
    %v283 = vunpack.c.l.b16 %v268
    %v284 = vunpack.c.l.b16 %v269
    %v285 = vpack.c.b16 %v282, %v281
    %v286 = vpack.c.b16 %v284, %v283
    %vm289 = vcmask 261120
    %v291 = vsel %vm289, %v265, 0
    %293 = vmatprep.subr.bf16.mxu0 0
    %294 = vmatpush1.bf16.msra.mxu0 0
    %295 = vmatprep.subr.bf16.mxu0 0
    %296 = vmatpush1.bf16.msra.mxu0 0
    %297 = vmatprep.subr.bf16.mxu0 0
    %298 = vmatpush1.bf16.msra.mxu0 0
    %299 = vmatprep.subr.bf16.mxu0 0
    %300 = vmatpush1.bf16.msra.mxu0 0
    %301 = vmatprep.subr.bf16.mxu0 0
    %302 = vmatpush1.bf16.msra.mxu0 0
    %303 = vmatprep.subr.bf16.mxu0 0
    %304 = vmatpush1.bf16.msra.mxu0 0
    %305 = vmatprep.subr.bf16.mxu0 0
    %306 = vmatpush1.bf16.msra.mxu0 %v286
    %307 = vmatprep.subr.bf16.mxu0 0
    %308 = vmatpush1.bf16.msra.mxu0 %v285
    %309 = vmatprep.subr.bf16.mxu0 0
    %310 = vmatpush2.bf16.msra.mxu0 0
    %311 = vmatprep.subr.bf16.mxu0 0
    %312 = vmatpush2.bf16.msra.mxu0 0
    %313 = vmatprep.subr.bf16.mxu0 0
    %314 = vmatpush2.bf16.msra.mxu0 0
    %315 = vmatprep.subr.bf16.mxu0 0
    %316 = vmatpush2.bf16.msra.mxu0 0
    %317 = vmatprep.subr.bf16.mxu0 0
    %318 = vmatpush2.bf16.msra.mxu0 0
    %319 = vmatprep.subr.bf16.mxu0 0
    %320 = vmatpush2.bf16.msra.mxu0 0
    %321 = vmatprep.subr.bf16.mxu0 0
    %322 = vmatpush2.bf16.msra.mxu0 0
    %323 = vmatprep.subr.bf16.mxu0 0
    %324 = vmatpush2.bf16.msra.mxu0 0
    %325 = vmatprep.mubr.bf16.mxu0 0
    %326 = vmatmul.mubr.bf16.gmra.mxu0 %v291
    %v327 = vpop.f32.mrf.mxu0
    %v328 = vadd.f32 %v275, %v327
    %v329 = vpop.f32.mrf.mxu0
    %v330 = vpop.f32.mrf.mxu0
    %v331 = vadd.f32 %v275, %v330
    %v332 = vpop.f32.mrf.mxu0
    %333 = vdwg.mxu0
    %v334 = vld [vmem:[#allocation10] sm:$0xf]
    %v335 = vld [vmem:[#allocation10 + $0x4] sm:$0xf]
    %v336 = vld [vmem:[#allocation10 + $0x8] sm:$0xf]
    %v337 = vld [vmem:[#allocation10 + $0xc] sm:$0xf]
    %v338 = vld [vmem:[#allocation11] sm:$0x1]
    %v340 = vlaneseq
    %v341 = vshrl.u32 %v340, 7
    %v342 = vsub.s32 0, %v341
    %v343 = vrot.slane %v338, %v342
    %v349 = vunpack.c.l.b16 %v334
    %v350 = vunpack.c.l.b16 %v335
    %v351 = vunpack.c.l.b16 %v336
    %v352 = vunpack.c.l.b16 %v337
    %v353 = vpack.c.b16 %v350, %v349
    %v354 = vpack.c.b16 %v352, %v351
    %357 = vmatprep.subr.bf16.mxu0 0
    %358 = vmatpush1.bf16.msra.mxu0 0
    %359 = vmatprep.subr.bf16.mxu0 0
    %360 = vmatpush1.bf16.msra.mxu0 0
    %361 = vmatprep.subr.bf16.mxu0 0
    %362 = vmatpush1.bf16.msra.mxu0 0
    %363 = vmatprep.subr.bf16.mxu0 0
    %364 = vmatpush1.bf16.msra.mxu0 0
    %365 = vmatprep.subr.bf16.mxu0 0
    %366 = vmatpush1.bf16.msra.mxu0 0
    %367 = vmatprep.subr.bf16.mxu0 0
    %368 = vmatpush1.bf16.msra.mxu0 0
    %369 = vmatprep.subr.bf16.mxu0 0
    %370 = vmatpush1.bf16.msra.mxu0 %v354
    %371 = vmatprep.subr.bf16.mxu0 0
    %372 = vmatpush1.bf16.msra.mxu0 %v353
    %373 = vmatprep.subr.bf16.mxu0 0
    %374 = vmatpush2.bf16.msra.mxu0 0
    %375 = vmatprep.subr.bf16.mxu0 0
    %376 = vmatpush2.bf16.msra.mxu0 0
    %377 = vmatprep.subr.bf16.mxu0 0
    %378 = vmatpush2.bf16.msra.mxu0 0
    %379 = vmatprep.subr.bf16.mxu0 0
    %380 = vmatpush2.bf16.msra.mxu0 0
    %381 = vmatprep.subr.bf16.mxu0 0
    %382 = vmatpush2.bf16.msra.mxu0 0
    %383 = vmatprep.subr.bf16.mxu0 0
    %384 = vmatpush2.bf16.msra.mxu0 0
    %385 = vmatprep.subr.bf16.mxu0 0
    %386 = vmatpush2.bf16.msra.mxu0 0
    %387 = vmatprep.subr.bf16.mxu0 0
    %388 = vmatpush2.bf16.msra.mxu0 0
    %389 = vmatprep.mubr.bf16.mxu0 0
    %390 = vmatmul.mubr.bf16.gmra.mxu0 %v291
    %v391 = vpop.f32.mrf.mxu0
    %v392 = vadd.f32 %v343, %v391
    %v393 = vpop.f32.mrf.mxu0
    %v394 = vpop.f32.mrf.mxu0
    %v395 = vadd.f32 %v343, %v394
    %v396 = vpop.f32.mrf.mxu0
    %397 = vdwg.mxu0
    %v398 = vpack.c.bf16 %v395, %v392
    %v401 = vunpack.c.l.b16 %v201
    %v402 = vunpack.c.l.b16 %v202
    %v403 = vpack.c.b16 %v402, %v401
    %vm404 = vcmask 130048
    %v406 = vsel %vm404, %v403, 0
    %408 = vmatprep.subr.bf16.mxu0 0
    %409 = vmatpush1.bf16.msra.mxu0 0
    %410 = vmatprep.subr.bf16.mxu0 0
    %411 = vmatpush1.bf16.msra.mxu0 0
    %412 = vmatprep.subr.bf16.mxu0 0
    %413 = vmatpush1.bf16.msra.mxu0 0
    %414 = vmatprep.subr.bf16.mxu0 0
    %415 = vmatpush1.bf16.msra.mxu0 0
    %416 = vmatprep.subr.bf16.mxu0 0
    %417 = vmatpush1.bf16.msra.mxu0 0
    %418 = vmatprep.subr.bf16.mxu0 0
    %419 = vmatpush1.bf16.msra.mxu0 0
    %420 = vmatprep.subr.bf16.mxu0 0
    %421 = vmatpush1.bf16.msra.mxu0 0
    %422 = vmatprep.subr.bf16.mxu0 0
    %423 = vmatpush1.bf16.msra.mxu0 %v398
    %424 = vmatprep.subr.bf16.mxu0 0
    %425 = vmatpush2.bf16.msra.mxu0 0
    %426 = vmatprep.subr.bf16.mxu0 0
    %427 = vmatpush2.bf16.msra.mxu0 0
    %428 = vmatprep.subr.bf16.mxu0 0
    %429 = vmatpush2.bf16.msra.mxu0 0
    %430 = vmatprep.subr.bf16.mxu0 0
    %431 = vmatpush2.bf16.msra.mxu0 0
    %432 = vmatprep.subr.bf16.mxu0 0
    %433 = vmatpush2.bf16.msra.mxu0 0
    %434 = vmatprep.subr.bf16.mxu0 0
    %435 = vmatpush2.bf16.msra.mxu0 0
    %436 = vmatprep.subr.bf16.mxu0 0
    %437 = vmatpush2.bf16.msra.mxu0 0
    %438 = vmatprep.subr.bf16.mxu0 0
    %439 = vmatpush2.bf16.msra.mxu0 0
    %440 = vmatprep.mubr.bf16.mxu0 0
    %441 = vmatmul.mubr.bf16.gmra.mxu0 %v406
    %v442 = vpop.f32.mrf.mxu0
    %v443 = vadd.f32 0.0, %v442
    %v444 = vpop.f32.mrf.mxu0
    %v445 = vpop.f32.mrf.mxu0
    %v446 = vadd.f32 0.0, %v445
    %v447 = vpop.f32.mrf.mxu0
    %448 = vdwg.mxu0
    %v449 = vadd.f32 %v328, %v443
    %v450 = vadd.f32 %v331, %v446
    %v451 = vmul.f32 %v449, %v449
    %v452 = vmul.f32 %v450, %v450
    %v453 = vmul.f32 %v449, %v451
    %v454 = vmul.f32 %v450, %v452
    %v455 = vmul.f32 %v453, 0.044715
    %v456 = vmul.f32 %v454, 0.044715
    %v457 = vadd.f32 %v449, %v455
    %v458 = vadd.f32 %v450, %v456
    %v459 = vmul.f32 %v457, 0.7978846
    %v460 = vmul.f32 %v458, 0.7978846
    %v461 = vtanh.pop %v459
    %v462 = vtanh.pop %v460
    %v463 = vadd.f32 %v461, 1.0
    %v464 = vadd.f32 %v462, 1.0
    %v465 = vmul.f32 %v463, 0.5
    %v466 = vmul.f32 %v464, 0.5
    %v467 = vmul.f32 %v449, %v465
    %v468 = vmul.f32 %v450, %v466
    %v469 = vpack.c.bf16 %v468, %v467
    %s470 = scalar_lea.vmem [#allocation7], 16
    %v471 = vld [vmem:[%s470] sm:$0xf]
    %v472 = vld [vmem:[%s470 + $0x4] sm:$0xf]
    %v473 = vld [vmem:[%s470 + $0x8] sm:$0xf]
    %v474 = vld [vmem:[%s470 + $0xc] sm:$0xf]
    %s475 = scalar_lea.vmem [#allocation8], 1
    %v476 = vld [vmem:[%s475] sm:$0x1]
    %v478 = vlaneseq
    %v479 = vshrl.u32 %v478, 7
    %v480 = vsub.s32 0, %v479
    %v481 = vrot.slane %v476, %v480
    %v487 = vunpack.c.l.b16 %v471
    %v488 = vunpack.c.l.b16 %v472
    %v489 = vunpack.c.l.b16 %v473
    %v490 = vunpack.c.l.b16 %v474
    %v491 = vpack.c.b16 %v488, %v487
    %v492 = vpack.c.b16 %v490, %v489
    %v496 = vsel %vm289, %v469, 0
    %498 = vmatprep.subr.bf16.mxu0 0
    %499 = vmatpush1.bf16.msra.mxu0 0
    %500 = vmatprep.subr.bf16.mxu0 0
    %501 = vmatpush1.bf16.msra.mxu0 0
    %502 = vmatprep.subr.bf16.mxu0 0
    %503 = vmatpush1.bf16.msra.mxu0 0
    %504 = vmatprep.subr.bf16.mxu0 0
    %505 = vmatpush1.bf16.msra.mxu0 0
    %506 = vmatprep.subr.bf16.mxu0 0
    %507 = vmatpush1.bf16.msra.mxu0 0
    %508 = vmatprep.subr.bf16.mxu0 0
    %509 = vmatpush1.bf16.msra.mxu0 0
    %510 = vmatprep.subr.bf16.mxu0 0
    %511 = vmatpush1.bf16.msra.mxu0 %v492
    %512 = vmatprep.subr.bf16.mxu0 0
    %513 = vmatpush1.bf16.msra.mxu0 %v491
    %514 = vmatprep.subr.bf16.mxu0 0
    %515 = vmatpush2.bf16.msra.mxu0 0
    %516 = vmatprep.subr.bf16.mxu0 0
    %517 = vmatpush2.bf16.msra.mxu0 0
    %518 = vmatprep.subr.bf16.mxu0 0
    %519 = vmatpush2.bf16.msra.mxu0 0
    %520 = vmatprep.subr.bf16.mxu0 0
    %521 = vmatpush2.bf16.msra.mxu0 0
    %522 = vmatprep.subr.bf16.mxu0 0
    %523 = vmatpush2.bf16.msra.mxu0 0
    %524 = vmatprep.subr.bf16.mxu0 0
    %525 = vmatpush2.bf16.msra.mxu0 0
    %526 = vmatprep.subr.bf16.mxu0 0
    %527 = vmatpush2.bf16.msra.mxu0 0
    %528 = vmatprep.subr.bf16.mxu0 0
    %529 = vmatpush2.bf16.msra.mxu0 0
    %530 = vmatprep.mubr.bf16.mxu0 0
    %531 = vmatmul.mubr.bf16.gmra.mxu0 %v496
    %v532 = vpop.f32.mrf.mxu0
    %v533 = vadd.f32 %v481, %v532
    %v534 = vpop.f32.mrf.mxu0
    %v535 = vpop.f32.mrf.mxu0
    %v536 = vadd.f32 %v481, %v535
    %v537 = vpop.f32.mrf.mxu0
    %538 = vdwg.mxu0
    %s539 = scalar_lea.vmem [#allocation10], 16
    %v540 = vld [vmem:[%s539] sm:$0xf]
    %v541 = vld [vmem:[%s539 + $0x4] sm:$0xf]
    %v542 = vld [vmem:[%s539 + $0x8] sm:$0xf]
    %v543 = vld [vmem:[%s539 + $0xc] sm:$0xf]
    %s544 = scalar_lea.vmem [#allocation11], 1
    %v545 = vld [vmem:[%s544] sm:$0x1]
    %v547 = vlaneseq
    %v548 = vshrl.u32 %v547, 7
    %v549 = vsub.s32 0, %v548
    %v550 = vrot.slane %v545, %v549
    %v556 = vunpack.c.l.b16 %v540
    %v557 = vunpack.c.l.b16 %v541
    %v558 = vunpack.c.l.b16 %v542
    %v559 = vunpack.c.l.b16 %v543
    %v560 = vpack.c.b16 %v557, %v556
    %v561 = vpack.c.b16 %v559, %v558
    %564 = vmatprep.subr.bf16.mxu0 0
    %565 = vmatpush1.bf16.msra.mxu0 0
    %566 = vmatprep.subr.bf16.mxu0 0
    %567 = vmatpush1.bf16.msra.mxu0 0
    %568 = vmatprep.subr.bf16.mxu0 0
    %569 = vmatpush1.bf16.msra.mxu0 0
    %570 = vmatprep.subr.bf16.mxu0 0
    %571 = vmatpush1.bf16.msra.mxu0 0
    %572 = vmatprep.subr.bf16.mxu0 0
    %573 = vmatpush1.bf16.msra.mxu0 0
    %574 = vmatprep.subr.bf16.mxu0 0
    %575 = vmatpush1.bf16.msra.mxu0 0
    %576 = vmatprep.subr.bf16.mxu0 0
    %577 = vmatpush1.bf16.msra.mxu0 %v561
    %578 = vmatprep.subr.bf16.mxu0 0
    %579 = vmatpush1.bf16.msra.mxu0 %v560
    %580 = vmatprep.subr.bf16.mxu0 0
    %581 = vmatpush2.bf16.msra.mxu0 0
    %582 = vmatprep.subr.bf16.mxu0 0
    %583 = vmatpush2.bf16.msra.mxu0 0
    %584 = vmatprep.subr.bf16.mxu0 0
    %585 = vmatpush2.bf16.msra.mxu0 0
    %586 = vmatprep.subr.bf16.mxu0 0
    %587 = vmatpush2.bf16.msra.mxu0 0
    %588 = vmatprep.subr.bf16.mxu0 0
    %589 = vmatpush2.bf16.msra.mxu0 0
    %590 = vmatprep.subr.bf16.mxu0 0
    %591 = vmatpush2.bf16.msra.mxu0 0
    %592 = vmatprep.subr.bf16.mxu0 0
    %593 = vmatpush2.bf16.msra.mxu0 0
    %594 = vmatprep.subr.bf16.mxu0 0
    %595 = vmatpush2.bf16.msra.mxu0 0
    %596 = vmatprep.mubr.bf16.mxu0 0
    %597 = vmatmul.mubr.bf16.gmra.mxu0 %v496
    %v598 = vpop.f32.mrf.mxu0
    %v599 = vadd.f32 %v550, %v598
    %v600 = vpop.f32.mrf.mxu0
    %v601 = vpop.f32.mrf.mxu0
    %v602 = vadd.f32 %v550, %v601
    %v603 = vpop.f32.mrf.mxu0
    %604 = vdwg.mxu0
    %v605 = vpack.c.bf16 %v602, %v599
    %606 = vmatprep.subr.bf16.mxu0 0
    %607 = vmatpush1.bf16.msra.mxu0 0
    %608 = vmatprep.subr.bf16.mxu0 0
    %609 = vmatpush1.bf16.msra.mxu0 0
    %610 = vmatprep.subr.bf16.mxu0 0
    %611 = vmatpush1.bf16.msra.mxu0 0
    %612 = vmatprep.subr.bf16.mxu0 0
    %613 = vmatpush1.bf16.msra.mxu0 0
    %614 = vmatprep.subr.bf16.mxu0 0
    %615 = vmatpush1.bf16.msra.mxu0 0
    %616 = vmatprep.subr.bf16.mxu0 0
    %617 = vmatpush1.bf16.msra.mxu0 0
    %618 = vmatprep.subr.bf16.mxu0 0
    %619 = vmatpush1.bf16.msra.mxu0 0
    %620 = vmatprep.subr.bf16.mxu0 0
    %621 = vmatpush1.bf16.msra.mxu0 %v605
    %622 = vmatprep.subr.bf16.mxu0 0
    %623 = vmatpush2.bf16.msra.mxu0 0
    %624 = vmatprep.subr.bf16.mxu0 0
    %625 = vmatpush2.bf16.msra.mxu0 0
    %626 = vmatprep.subr.bf16.mxu0 0
    %627 = vmatpush2.bf16.msra.mxu0 0
    %628 = vmatprep.subr.bf16.mxu0 0
    %629 = vmatpush2.bf16.msra.mxu0 0
    %630 = vmatprep.subr.bf16.mxu0 0
    %631 = vmatpush2.bf16.msra.mxu0 0
    %632 = vmatprep.subr.bf16.mxu0 0
    %633 = vmatpush2.bf16.msra.mxu0 0
    %634 = vmatprep.subr.bf16.mxu0 0
    %635 = vmatpush2.bf16.msra.mxu0 0
    %636 = vmatprep.subr.bf16.mxu0 0
    %637 = vmatpush2.bf16.msra.mxu0 0
    %638 = vmatprep.mubr.bf16.mxu0 0
    %639 = vmatmul.mubr.bf16.gmra.mxu0 %v406
    %v640 = vpop.f32.mrf.mxu0
    %v641 = vadd.f32 0.0, %v640
    %v642 = vpop.f32.mrf.mxu0
    %v643 = vpop.f32.mrf.mxu0
    %v644 = vadd.f32 0.0, %v643
    %v645 = vpop.f32.mrf.mxu0
    %646 = vdwg.mxu0
    %v647 = vadd.f32 %v533, %v641
    %v648 = vadd.f32 %v536, %v644
    %v649 = vmul.f32 %v647, %v647
    %v650 = vmul.f32 %v648, %v648
    %v651 = vmul.f32 %v647, %v649
    %v652 = vmul.f32 %v648, %v650
    %v653 = vmul.f32 %v651, 0.044715
    %v654 = vmul.f32 %v652, 0.044715
    %v655 = vadd.f32 %v647, %v653
    %v656 = vadd.f32 %v648, %v654
    %v657 = vmul.f32 %v655, 0.7978846
    %v658 = vmul.f32 %v656, 0.7978846
    %v659 = vtanh.pop %v657
    %v660 = vtanh.pop %v658
    %v661 = vadd.f32 %v659, 1.0
    %v662 = vadd.f32 %v660, 1.0
    %v663 = vmul.f32 %v661, 0.5
    %v664 = vmul.f32 %v662, 0.5
    %v665 = vmul.f32 %v647, %v663
    %v666 = vmul.f32 %v648, %v664
    %v667 = vpack.c.bf16 %v666, %v665
    %s668 = scalar_lea.vmem [#allocation7], 32
    %v669 = vld [vmem:[%s668] sm:$0xf]
    %v670 = vld [vmem:[%s668 + $0x4] sm:$0xf]
    %v671 = vld [vmem:[%s668 + $0x8] sm:$0xf]
    %v672 = vld [vmem:[%s668 + $0xc] sm:$0xf]
    %s673 = scalar_lea.vmem [#allocation8], 2
    %v674 = vld [vmem:[%s673] sm:$0x1]
    %v676 = vlaneseq
    %v677 = vshrl.u32 %v676, 7
    %v678 = vsub.s32 0, %v677
    %v679 = vrot.slane %v674, %v678
    %v685 = vunpack.c.l.b16 %v669
    %v686 = vunpack.c.l.b16 %v670
    %v687 = vunpack.c.l.b16 %v671
    %v688 = vunpack.c.l.b16 %v672
    %v689 = vpack.c.b16 %v686, %v685
    %v690 = vpack.c.b16 %v688, %v687
    %v694 = vsel %vm289, %v667, 0
    %696 = vmatprep.subr.bf16.mxu0 0
    %697 = vmatpush1.bf16.msra.mxu0 0
    %698 = vmatprep.subr.bf16.mxu0 0
    %699 = vmatpush1.bf16.msra.mxu0 0
    %700 = vmatprep.subr.bf16.mxu0 0
    %701 = vmatpush1.bf16.msra.mxu0 0
    %702 = vmatprep.subr.bf16.mxu0 0
    %703 = vmatpush1.bf16.msra.mxu0 0
    %704 = vmatprep.subr.bf16.mxu0 0
    %705 = vmatpush1.bf16.msra.mxu0 0
    %706 = vmatprep.subr.bf16.mxu0 0
    %707 = vmatpush1.bf16.msra.mxu0 0
    %708 = vmatprep.subr.bf16.mxu0 0
    %709 = vmatpush1.bf16.msra.mxu0 %v690
    %710 = vmatprep.subr.bf16.mxu0 0
    %711 = vmatpush1.bf16.msra.mxu0 %v689
    %712 = vmatprep.subr.bf16.mxu0 0
    %713 = vmatpush2.bf16.msra.mxu0 0
    %714 = vmatprep.subr.bf16.mxu0 0
    %715 = vmatpush2.bf16.msra.mxu0 0
    %716 = vmatprep.subr.bf16.mxu0 0
    %717 = vmatpush2.bf16.msra.mxu0 0
    %718 = vmatprep.subr.bf16.mxu0 0
    %719 = vmatpush2.bf16.msra.mxu0 0
    %720 = vmatprep.subr.bf16.mxu0 0
    %721 = vmatpush2.bf16.msra.mxu0 0
    %722 = vmatprep.subr.bf16.mxu0 0
    %723 = vmatpush2.bf16.msra.mxu0 0
    %724 = vmatprep.subr.bf16.mxu0 0
    %725 = vmatpush2.bf16.msra.mxu0 0
    %726 = vmatprep.subr.bf16.mxu0 0
    %727 = vmatpush2.bf16.msra.mxu0 0
    %728 = vmatprep.mubr.bf16.mxu0 0
    %729 = vmatmul.mubr.bf16.gmra.mxu0 %v694
    %v730 = vpop.f32.mrf.mxu0
    %v731 = vadd.f32 %v679, %v730
    %v732 = vpop.f32.mrf.mxu0
    %v733 = vpop.f32.mrf.mxu0
    %v734 = vadd.f32 %v679, %v733
    %v735 = vpop.f32.mrf.mxu0
    %736 = vdwg.mxu0
    %s737 = scalar_lea.vmem [#allocation10], 32
    %v738 = vld [vmem:[%s737] sm:$0xf]
    %v739 = vld [vmem:[%s737 + $0x4] sm:$0xf]
    %v740 = vld [vmem:[%s737 + $0x8] sm:$0xf]
    %v741 = vld [vmem:[%s737 + $0xc] sm:$0xf]
    %s742 = scalar_lea.vmem [#allocation11], 2
    %v743 = vld [vmem:[%s742] sm:$0x1]
    %v745 = vlaneseq
    %v746 = vshrl.u32 %v745, 7
    %v747 = vsub.s32 0, %v746
    %v748 = vrot.slane %v743, %v747
    %v754 = vunpack.c.l.b16 %v738
    %v755 = vunpack.c.l.b16 %v739
    %v756 = vunpack.c.l.b16 %v740
    %v757 = vunpack.c.l.b16 %v741
    %v758 = vpack.c.b16 %v755, %v754
    %v759 = vpack.c.b16 %v757, %v756
    %762 = vmatprep.subr.bf16.mxu0 0
    %763 = vmatpush1.bf16.msra.mxu0 0
    %764 = vmatprep.subr.bf16.mxu0 0
    %765 = vmatpush1.bf16.msra.mxu0 0
    %766 = vmatprep.subr.bf16.mxu0 0
    %767 = vmatpush1.bf16.msra.mxu0 0
    %768 = vmatprep.subr.bf16.mxu0 0
    %769 = vmatpush1.bf16.msra.mxu0 0
    %770 = vmatprep.subr.bf16.mxu0 0
    %771 = vmatpush1.bf16.msra.mxu0 0
    %772 = vmatprep.subr.bf16.mxu0 0
    %773 = vmatpush1.bf16.msra.mxu0 0
    %774 = vmatprep.subr.bf16.mxu0 0
    %775 = vmatpush1.bf16.msra.mxu0 %v759
    %776 = vmatprep.subr.bf16.mxu0 0
    %777 = vmatpush1.bf16.msra.mxu0 %v758
    %778 = vmatprep.subr.bf16.mxu0 0
    %779 = vmatpush2.bf16.msra.mxu0 0
    %780 = vmatprep.subr.bf16.mxu0 0
    %781 = vmatpush2.bf16.msra.mxu0 0
    %782 = vmatprep.subr.bf16.mxu0 0
    %783 = vmatpush2.bf16.msra.mxu0 0
    %784 = vmatprep.subr.bf16.mxu0 0
    %785 = vmatpush2.bf16.msra.mxu0 0
    %786 = vmatprep.subr.bf16.mxu0 0
    %787 = vmatpush2.bf16.msra.mxu0 0
    %788 = vmatprep.subr.bf16.mxu0 0
    %789 = vmatpush2.bf16.msra.mxu0 0
    %790 = vmatprep.subr.bf16.mxu0 0
    %791 = vmatpush2.bf16.msra.mxu0 0
    %792 = vmatprep.subr.bf16.mxu0 0
    %793 = vmatpush2.bf16.msra.mxu0 0
    %794 = vmatprep.mubr.bf16.mxu0 0
    %795 = vmatmul.mubr.bf16.gmra.mxu0 %v694
    %v796 = vpop.f32.mrf.mxu0
    %v797 = vadd.f32 %v748, %v796
    %v798 = vpop.f32.mrf.mxu0
    %v799 = vpop.f32.mrf.mxu0
    %v800 = vadd.f32 %v748, %v799
    %v801 = vpop.f32.mrf.mxu0
    %802 = vdwg.mxu0
    %v803 = vpack.c.bf16 %v800, %v797
    %804 = vmatprep.subr.bf16.mxu0 0
    %805 = vmatpush1.bf16.msra.mxu0 0
    %806 = vmatprep.subr.bf16.mxu0 0
    %807 = vmatpush1.bf16.msra.mxu0 0
    %808 = vmatprep.subr.bf16.mxu0 0
    %809 = vmatpush1.bf16.msra.mxu0 0
    %810 = vmatprep.subr.bf16.mxu0 0
    %811 = vmatpush1.bf16.msra.mxu0 0
    %812 = vmatprep.subr.bf16.mxu0 0
    %813 = vmatpush1.bf16.msra.mxu0 0
    %814 = vmatprep.subr.bf16.mxu0 0
    %815 = vmatpush1.bf16.msra.mxu0 0
    %816 = vmatprep.subr.bf16.mxu0 0
    %817 = vmatpush1.bf16.msra.mxu0 0
    %818 = vmatprep.subr.bf16.mxu0 0
    %819 = vmatpush1.bf16.msra.mxu0 %v803
    %820 = vmatprep.subr.bf16.mxu0 0
    %821 = vmatpush2.bf16.msra.mxu0 0
    %822 = vmatprep.subr.bf16.mxu0 0
    %823 = vmatpush2.bf16.msra.mxu0 0
    %824 = vmatprep.subr.bf16.mxu0 0
    %825 = vmatpush2.bf16.msra.mxu0 0
    %826 = vmatprep.subr.bf16.mxu0 0
    %827 = vmatpush2.bf16.msra.mxu0 0
    %828 = vmatprep.subr.bf16.mxu0 0
    %829 = vmatpush2.bf16.msra.mxu0 0
    %830 = vmatprep.subr.bf16.mxu0 0
    %831 = vmatpush2.bf16.msra.mxu0 0
    %832 = vmatprep.subr.bf16.mxu0 0
    %833 = vmatpush2.bf16.msra.mxu0 0
    %834 = vmatprep.subr.bf16.mxu0 0
    %835 = vmatpush2.bf16.msra.mxu0 0
    %836 = vmatprep.mubr.bf16.mxu0 0
    %837 = vmatmul.mubr.bf16.gmra.mxu0 %v406
    %v838 = vpop.f32.mrf.mxu0
    %v839 = vadd.f32 0.0, %v838
    %v840 = vpop.f32.mrf.mxu0
    %v841 = vpop.f32.mrf.mxu0
    %v842 = vadd.f32 0.0, %v841
    %v843 = vpop.f32.mrf.mxu0
    %844 = vdwg.mxu0
    %v845 = vadd.f32 %v731, %v839
    %v846 = vadd.f32 %v734, %v842
    %v847 = vmul.f32 %v845, %v845
    %v848 = vmul.f32 %v846, %v846
    %v849 = vmul.f32 %v845, %v847
    %v850 = vmul.f32 %v846, %v848
    %v851 = vmul.f32 %v849, 0.044715
    %v852 = vmul.f32 %v850, 0.044715
    %v853 = vadd.f32 %v845, %v851
    %v854 = vadd.f32 %v846, %v852
    %v855 = vmul.f32 %v853, 0.7978846
    %v856 = vmul.f32 %v854, 0.7978846
    %v857 = vtanh.pop %v855
    %v858 = vtanh.pop %v856
    %v859 = vadd.f32 %v857, 1.0
    %v860 = vadd.f32 %v858, 1.0
    %v861 = vmul.f32 %v859, 0.5
    %v862 = vmul.f32 %v860, 0.5
    %v863 = vmul.f32 %v845, %v861
    %v864 = vmul.f32 %v846, %v862
    %v865 = vpack.c.bf16 %v864, %v863
    %v866 = vld [vmem:[%s8] sm:$0xf]
    %v867 = vld [vmem:[%s8 + $0x4] sm:$0xf]
    %v868 = vld [vmem:[%s8 + $0x8] sm:$0xf]
    %v869 = vld [vmem:[%s8 + $0xc] sm:$0xf]
    %v870 = vld [vmem:[#allocation13] sm:$0x1]
    %v872 = vlaneseq
    %v873 = vshrl.u32 %v872, 7
    %v874 = vsub.s32 0, %v873
    %v875 = vrot.slane %v870, %v874
    %v881 = vunpack.c.l.b16 %v866
    %v882 = vunpack.c.l.b16 %v867
    %v883 = vunpack.c.l.b16 %v868
    %v884 = vunpack.c.l.b16 %v869
    %v885 = vpack.c.b16 %v882, %v881
    %v886 = vpack.c.b16 %v884, %v883
    %v890 = vsel %vm289, %v865, 0
    %892 = vmatprep.subr.bf16.mxu0 0
    %893 = vmatpush1.bf16.msra.mxu0 0
    %894 = vmatprep.subr.bf16.mxu0 0
    %895 = vmatpush1.bf16.msra.mxu0 0
    %896 = vmatprep.subr.bf16.mxu0 0
    %897 = vmatpush1.bf16.msra.mxu0 0
    %898 = vmatprep.subr.bf16.mxu0 0
    %899 = vmatpush1.bf16.msra.mxu0 0
    %900 = vmatprep.subr.bf16.mxu0 0
    %901 = vmatpush1.bf16.msra.mxu0 0
    %902 = vmatprep.subr.bf16.mxu0 0
    %903 = vmatpush1.bf16.msra.mxu0 0
    %904 = vmatprep.subr.bf16.mxu0 0
    %905 = vmatpush1.bf16.msra.mxu0 %v886
    %906 = vmatprep.subr.bf16.mxu0 0
    %907 = vmatpush1.bf16.msra.mxu0 %v885
    %908 = vmatprep.subr.bf16.mxu0 0
    %909 = vmatpush2.bf16.msra.mxu0 0
    %910 = vmatprep.subr.bf16.mxu0 0
    %911 = vmatpush2.bf16.msra.mxu0 0
    %912 = vmatprep.subr.bf16.mxu0 0
    %913 = vmatpush2.bf16.msra.mxu0 0
    %914 = vmatprep.subr.bf16.mxu0 0
    %915 = vmatpush2.bf16.msra.mxu0 0
    %916 = vmatprep.subr.bf16.mxu0 0
    %917 = vmatpush2.bf16.msra.mxu0 0
    %918 = vmatprep.subr.bf16.mxu0 0
    %919 = vmatpush2.bf16.msra.mxu0 0
    %920 = vmatprep.subr.bf16.mxu0 0
    %921 = vmatpush2.bf16.msra.mxu0 0
    %922 = vmatprep.subr.bf16.mxu0 0
    %923 = vmatpush2.bf16.msra.mxu0 0
    %924 = vmatprep.mubr.bf16.mxu0 0
    %925 = vmatmul.mubr.bf16.gmra.mxu0 %v890
    %v926 = vpop.f32.mrf.mxu0
    %v927 = vadd.f32 %v875, %v926
    %v928 = vpop.f32.mrf.mxu0
    %v929 = vpop.f32.mrf.mxu0
    %v930 = vadd.f32 %v875, %v929
    %v931 = vpop.f32.mrf.mxu0
    %932 = vdwg.mxu0
    %933 = vst [vmem:[#allocation20] sm:$0xff] %v927
    %934 = vst [vmem:[#allocation20 + $0x8] sm:$0xff] %v930
    %v935 = vsel %vm289, %v863, 0.0
    %v936 = vrot.slane %v935, 4
    %v937 = vadd.f32 %v935, %v936
    %v938 = vrot.slane %v937, 2
    %v939 = vadd.f32 %v937, %v938
    %v940 = vrot.slane %v939, 1
    %v941 = vadd.f32 %v939, %v940
    %v942 = vsel %vm289, %v864, 0.0
    %v943 = vrot.slane %v942, 4
    %v944 = vadd.f32 %v942, %v943
    %v945 = vrot.slane %v944, 2
    %v946 = vadd.f32 %v944, %v945
    %v947 = vrot.slane %v946, 1
    %v948 = vadd.f32 %v946, %v947
    %v949 = vmul.f32 %v941, 0.125
    %v950 = vmul.f32 %v948, 0.125
    %v951 = vsel %vm289, %v863, -inf
    %v952 = vrot.slane %v951, 4
    %v953 = vmax.f32 %v951, %v952
    %v954 = vrot.slane %v953, 2
    %v955 = vmax.f32 %v953, %v954
    %v956 = vrot.slane %v955, 1
    %v957 = vmax.f32 %v955, %v956
    %v958 = vsel %vm289, %v864, -inf
    %v959 = vrot.slane %v958, 4
    %v960 = vmax.f32 %v958, %v959
    %v961 = vrot.slane %v960, 2
    %v962 = vmax.f32 %v960, %v961
    %v963 = vrot.slane %v962, 1
    %v964 = vmax.f32 %v962, %v963
    %v965 = vsub.f32 %v863, %v949
    %v966 = vsub.f32 %v864, %v950
    %v967 = vmul.f32 %v965, %v965
    %v968 = vmul.f32 %v966, %v966
    %v969 = vsel %vm289, %v967, 0.0
    %v970 = vrot.slane %v969, 4
    %v971 = vadd.f32 %v969, %v970
    %v972 = vrot.slane %v971, 2
    %v973 = vadd.f32 %v971, %v972
    %v974 = vrot.slane %v973, 1
    %v975 = vadd.f32 %v973, %v974
    %v976 = vsel %vm289, %v968, 0.0
    %v977 = vrot.slane %v976, 4
    %v978 = vadd.f32 %v976, %v977
    %v979 = vrot.slane %v978, 2
    %v980 = vadd.f32 %v978, %v979
    %v981 = vrot.slane %v980, 1
    %v982 = vadd.f32 %v980, %v981
    %v983 = vmul.f32 %v975, 0.14285715
    %v984 = vmul.f32 %v982, 0.14285715
    %v985 = vrsqrt.pop %v983
    %v986 = vmul.f32 %v983, %v985
    %vm987 = vcmp.eq.f32.partialorder %v983, inf
    %v988 = vsel %vm987, %v983, %v986
    %vm989 = vcmp.eq.f32.partialorder %v983, 0.0
    %v990 = vand.u32 %v983, 2147483648
    %v991 = vsel %vm989, %v990, %v988
    %v992 = vrsqrt.pop %v984
    %v993 = vmul.f32 %v984, %v992
    %vm994 = vcmp.eq.f32.partialorder %v984, inf
    %v995 = vsel %vm994, %v984, %v993
    %vm996 = vcmp.eq.f32.partialorder %v984, 0.0
    %v997 = vand.u32 %v984, 2147483648
    %v998 = vsel %vm996, %v997, %v995
    %v999 = vpack.c.bf16 %v949, %v949
    %v1000 = vpack.c.bf16 %v950, %v950
    %v1001 = vld [vmem:[#allocation14] sm:$0xf]
    %v1002 = vld [vmem:[#allocation14 + $0x4] sm:$0xf]
    %v1003 = vld [vmem:[#allocation14 + $0x8] sm:$0xf]
    %v1004 = vld [vmem:[#allocation14 + $0xc] sm:$0xf]
    %v1005 = vpack.c.bf16 %v957, %v957
    %v1006 = vpack.c.bf16 %v964, %v964
    %s1007 = scalar_lea.vmem [#allocation14], 16
    %v1008 = vld [vmem:[%s1007] sm:$0xf]
    %v1009 = vld [vmem:[%s1007 + $0x4] sm:$0xf]
    %v1010 = vld [vmem:[%s1007 + $0x8] sm:$0xf]
    %v1011 = vld [vmem:[%s1007 + $0xc] sm:$0xf]
    %v1014 = vunpack.c.l.b16 %v1005
    %v1015 = vunpack.c.l.b16 %v1006
    %vm1016 = vcmask 1041409
    %v1017 = vsel %vm1016, %v1015, %v1014
    %v1018 = vpack.c.b16 %v1017, %v1017
    %v1023 = vunpack.c.l.b16 %v1008
    %v1024 = vunpack.c.l.b16 %v1009
    %v1025 = vunpack.c.l.b16 %v1010
    %v1026 = vunpack.c.l.b16 %v1011
    %v1027 = vpack.c.b16 %v1024, %v1023
    %v1028 = vpack.c.b16 %v1026, %v1025
    %v1032 = vsel %vm289, %v1018, 0
    %1034 = vmatprep.subr.bf16.mxu0 0
    %1035 = vmatpush1.bf16.msra.mxu0 0
    %1036 = vmatprep.subr.bf16.mxu0 0
    %1037 = vmatpush1.bf16.msra.mxu0 0
    %1038 = vmatprep.subr.bf16.mxu0 0
    %1039 = vmatpush1.bf16.msra.mxu0 0
    %1040 = vmatprep.subr.bf16.mxu0 0
    %1041 = vmatpush1.bf16.msra.mxu0 0
    %1042 = vmatprep.subr.bf16.mxu0 0
    %1043 = vmatpush1.bf16.msra.mxu0 0
    %1044 = vmatprep.subr.bf16.mxu0 0
    %1045 = vmatpush1.bf16.msra.mxu0 0
    %1046 = vmatprep.subr.bf16.mxu0 0
    %1047 = vmatpush1.bf16.msra.mxu0 %v1028
    %1048 = vmatprep.subr.bf16.mxu0 0
    %1049 = vmatpush1.bf16.msra.mxu0 %v1027
    %1050 = vmatprep.subr.bf16.mxu0 0
    %1051 = vmatpush2.bf16.msra.mxu0 0
    %1052 = vmatprep.subr.bf16.mxu0 0
    %1053 = vmatpush2.bf16.msra.mxu0 0
    %1054 = vmatprep.subr.bf16.mxu0 0
    %1055 = vmatpush2.bf16.msra.mxu0 0
    %1056 = vmatprep.subr.bf16.mxu0 0
    %1057 = vmatpush2.bf16.msra.mxu0 0
    %1058 = vmatprep.subr.bf16.mxu0 0
    %1059 = vmatpush2.bf16.msra.mxu0 0
    %1060 = vmatprep.subr.bf16.mxu0 0
    %1061 = vmatpush2.bf16.msra.mxu0 0
    %1062 = vmatprep.subr.bf16.mxu0 0
    %1063 = vmatpush2.bf16.msra.mxu0 0
    %1064 = vmatprep.subr.bf16.mxu0 0
    %1065 = vmatpush2.bf16.msra.mxu0 0
    %1066 = vmatprep.mubr.bf16.mxu0 0
    %1067 = vmatmul.mubr.bf16.gmra.mxu0 %v1032
    %v1068 = vpop.f32.mrf.mxu0
    %v1069 = vadd.f32 0.0, %v1068
    %v1070 = vpop.f32.mrf.mxu0
    %v1071 = vpop.f32.mrf.mxu0
    %v1072 = vpop.f32.mrf.mxu0
    %1073 = vdwg.mxu0
    %v1076 = vunpack.c.l.b16 %v999
    %v1077 = vunpack.c.l.b16 %v1000
    %v1078 = vsel %vm1016, %v1077, %v1076
    %v1079 = vpack.c.b16 %v1078, %v1078
    %v1084 = vunpack.c.l.b16 %v1001
    %v1085 = vunpack.c.l.b16 %v1002
    %v1086 = vunpack.c.l.b16 %v1003
    %v1087 = vunpack.c.l.b16 %v1004
    %v1088 = vpack.c.b16 %v1085, %v1084
    %v1089 = vpack.c.b16 %v1087, %v1086
    %v1093 = vsel %vm289, %v1079, 0
    %1095 = vmatprep.subr.bf16.mxu0 0
    %1096 = vmatpush1.bf16.msra.mxu0 0
    %1097 = vmatprep.subr.bf16.mxu0 0
    %1098 = vmatpush1.bf16.msra.mxu0 0
    %1099 = vmatprep.subr.bf16.mxu0 0
    %1100 = vmatpush1.bf16.msra.mxu0 0
    %1101 = vmatprep.subr.bf16.mxu0 0
    %1102 = vmatpush1.bf16.msra.mxu0 0
    %1103 = vmatprep.subr.bf16.mxu0 0
    %1104 = vmatpush1.bf16.msra.mxu0 0
    %1105 = vmatprep.subr.bf16.mxu0 0
    %1106 = vmatpush1.bf16.msra.mxu0 0
    %1107 = vmatprep.subr.bf16.mxu0 0
    %1108 = vmatpush1.bf16.msra.mxu0 %v1089
    %1109 = vmatprep.subr.bf16.mxu0 0
    %1110 = vmatpush1.bf16.msra.mxu0 %v1088
    %1111 = vmatprep.subr.bf16.mxu0 0
    %1112 = vmatpush2.bf16.msra.mxu0 0
    %1113 = vmatprep.subr.bf16.mxu0 0
    %1114 = vmatpush2.bf16.msra.mxu0 0
    %1115 = vmatprep.subr.bf16.mxu0 0
    %1116 = vmatpush2.bf16.msra.mxu0 0
    %1117 = vmatprep.subr.bf16.mxu0 0
    %1118 = vmatpush2.bf16.msra.mxu0 0
    %1119 = vmatprep.subr.bf16.mxu0 0
    %1120 = vmatpush2.bf16.msra.mxu0 0
    %1121 = vmatprep.subr.bf16.mxu0 0
    %1122 = vmatpush2.bf16.msra.mxu0 0
    %1123 = vmatprep.subr.bf16.mxu0 0
    %1124 = vmatpush2.bf16.msra.mxu0 0
    %1125 = vmatprep.subr.bf16.mxu0 0
    %1126 = vmatpush2.bf16.msra.mxu0 0
    %1127 = vmatprep.mubr.bf16.mxu0 0
    %1128 = vmatmul.mubr.bf16.gmra.mxu0 %v1093
    %v1129 = vpop.f32.mrf.mxu0
    %v1130 = vadd.f32 %v1069, %v1129
    %v1131 = vpop.f32.mrf.mxu0
    %v1132 = vpop.f32.mrf.mxu0
    %v1133 = vpop.f32.mrf.mxu0
    %1134 = vdwg.mxu0
    %v1135 = vpack.c.bf16 %v941, %v941
    %v1136 = vpack.c.bf16 %v948, %v948
    %s1137 = scalar_lea.vmem [#allocation14], 32
    %v1138 = vld [vmem:[%s1137] sm:$0xf]
    %v1139 = vld [vmem:[%s1137 + $0x4] sm:$0xf]
    %v1140 = vld [vmem:[%s1137 + $0x8] sm:$0xf]
    %v1141 = vld [vmem:[%s1137 + $0xc] sm:$0xf]
    %v1144 = vunpack.c.l.b16 %v1135
    %v1145 = vunpack.c.l.b16 %v1136
    %v1146 = vsel %vm1016, %v1145, %v1144
    %v1147 = vpack.c.b16 %v1146, %v1146
    %v1152 = vunpack.c.l.b16 %v1138
    %v1153 = vunpack.c.l.b16 %v1139
    %v1154 = vunpack.c.l.b16 %v1140
    %v1155 = vunpack.c.l.b16 %v1141
    %v1156 = vpack.c.b16 %v1153, %v1152
    %v1157 = vpack.c.b16 %v1155, %v1154
    %v1161 = vsel %vm289, %v1147, 0
    %1163 = vmatprep.subr.bf16.mxu0 0
    %1164 = vmatpush1.bf16.msra.mxu0 0
    %1165 = vmatprep.subr.bf16.mxu0 0
    %1166 = vmatpush1.bf16.msra.mxu0 0
    %1167 = vmatprep.subr.bf16.mxu0 0
    %1168 = vmatpush1.bf16.msra.mxu0 0
    %1169 = vmatprep.subr.bf16.mxu0 0
    %1170 = vmatpush1.bf16.msra.mxu0 0
    %1171 = vmatprep.subr.bf16.mxu0 0
    %1172 = vmatpush1.bf16.msra.mxu0 0
    %1173 = vmatprep.subr.bf16.mxu0 0
    %1174 = vmatpush1.bf16.msra.mxu0 0
    %1175 = vmatprep.subr.bf16.mxu0 0
    %1176 = vmatpush1.bf16.msra.mxu0 %v1157
    %1177 = vmatprep.subr.bf16.mxu0 0
    %1178 = vmatpush1.bf16.msra.mxu0 %v1156
    %1179 = vmatprep.subr.bf16.mxu0 0
    %1180 = vmatpush2.bf16.msra.mxu0 0
    %1181 = vmatprep.subr.bf16.mxu0 0
    %1182 = vmatpush2.bf16.msra.mxu0 0
    %1183 = vmatprep.subr.bf16.mxu0 0
    %1184 = vmatpush2.bf16.msra.mxu0 0
    %1185 = vmatprep.subr.bf16.mxu0 0
    %1186 = vmatpush2.bf16.msra.mxu0 0
    %1187 = vmatprep.subr.bf16.mxu0 0
    %1188 = vmatpush2.bf16.msra.mxu0 0
    %1189 = vmatprep.subr.bf16.mxu0 0
    %1190 = vmatpush2.bf16.msra.mxu0 0
    %1191 = vmatprep.subr.bf16.mxu0 0
    %1192 = vmatpush2.bf16.msra.mxu0 0
    %1193 = vmatprep.subr.bf16.mxu0 0
    %1194 = vmatpush2.bf16.msra.mxu0 0
    %1195 = vmatprep.mubr.bf16.mxu0 0
    %1196 = vmatmul.mubr.bf16.gmra.mxu0 %v1161
    %v1197 = vpop.f32.mrf.mxu0
    %v1198 = vadd.f32 0.0, %v1197
    %v1199 = vpop.f32.mrf.mxu0
    %v1200 = vpop.f32.mrf.mxu0
    %v1201 = vpop.f32.mrf.mxu0
    %1202 = vdwg.mxu0
    %v1203 = vadd.f32 %v1130, %v1198
    %v1204 = vpack.c.bf16 %v991, %v991
    %v1205 = vpack.c.bf16 %v998, %v998
    %s1206 = scalar_lea.vmem [#allocation14], 48
    %v1207 = vld [vmem:[%s1206] sm:$0xf]
    %v1208 = vld [vmem:[%s1206 + $0x4] sm:$0xf]
    %v1209 = vld [vmem:[%s1206 + $0x8] sm:$0xf]
    %v1210 = vld [vmem:[%s1206 + $0xc] sm:$0xf]
    %v1213 = vunpack.c.l.b16 %v1204
    %v1214 = vunpack.c.l.b16 %v1205
    %v1215 = vsel %vm1016, %v1214, %v1213
    %v1216 = vpack.c.b16 %v1215, %v1215
    %v1221 = vunpack.c.l.b16 %v1207
    %v1222 = vunpack.c.l.b16 %v1208
    %v1223 = vunpack.c.l.b16 %v1209
    %v1224 = vunpack.c.l.b16 %v1210
    %v1225 = vpack.c.b16 %v1222, %v1221
    %v1226 = vpack.c.b16 %v1224, %v1223
    %v1230 = vsel %vm289, %v1216, 0
    %1232 = vmatprep.subr.bf16.mxu0 0
    %1233 = vmatpush1.bf16.msra.mxu0 0
    %1234 = vmatprep.subr.bf16.mxu0 0
    %1235 = vmatpush1.bf16.msra.mxu0 0
    %1236 = vmatprep.subr.bf16.mxu0 0
    %1237 = vmatpush1.bf16.msra.mxu0 0
    %1238 = vmatprep.subr.bf16.mxu0 0
    %1239 = vmatpush1.bf16.msra.mxu0 0
    %1240 = vmatprep.subr.bf16.mxu0 0
    %1241 = vmatpush1.bf16.msra.mxu0 0
    %1242 = vmatprep.subr.bf16.mxu0 0
    %1243 = vmatpush1.bf16.msra.mxu0 0
    %1244 = vmatprep.subr.bf16.mxu0 0
    %1245 = vmatpush1.bf16.msra.mxu0 %v1226
    %1246 = vmatprep.subr.bf16.mxu0 0
    %1247 = vmatpush1.bf16.msra.mxu0 %v1225
    %1248 = vmatprep.subr.bf16.mxu0 0
    %1249 = vmatpush2.bf16.msra.mxu0 0
    %1250 = vmatprep.subr.bf16.mxu0 0
    %1251 = vmatpush2.bf16.msra.mxu0 0
    %1252 = vmatprep.subr.bf16.mxu0 0
    %1253 = vmatpush2.bf16.msra.mxu0 0
    %1254 = vmatprep.subr.bf16.mxu0 0
    %1255 = vmatpush2.bf16.msra.mxu0 0
    %1256 = vmatprep.subr.bf16.mxu0 0
    %1257 = vmatpush2.bf16.msra.mxu0 0
    %1258 = vmatprep.subr.bf16.mxu0 0
    %1259 = vmatpush2.bf16.msra.mxu0 0
    %1260 = vmatprep.subr.bf16.mxu0 0
    %1261 = vmatpush2.bf16.msra.mxu0 0
    %1262 = vmatprep.subr.bf16.mxu0 0
    %1263 = vmatpush2.bf16.msra.mxu0 0
    %1264 = vmatprep.mubr.bf16.mxu0 0
    %1265 = vmatmul.mubr.bf16.gmra.mxu0 %v1230
    %v1266 = vpop.f32.mrf.mxu0
    %v1267 = vadd.f32 0.0, %v1266
    %v1268 = vpop.f32.mrf.mxu0
    %v1269 = vpop.f32.mrf.mxu0
    %v1270 = vpop.f32.mrf.mxu0
    %1271 = vdwg.mxu0
    %v1272 = vadd.f32 %v1203, %v1267
    %v1273 = vld [vmem:[#allocation16] sm:$0x1]
    %v1275 = vlaneseq
    %v1276 = vshrl.u32 %v1275, 7
    %v1277 = vsub.s32 0, %v1276
    %v1278 = vrot.slane %v1273, %v1277
    %v1280 = vadd.f32 %v1272, %v1278
    %v1281 = vmul.f32 %v1280, %v1280
    %v1282 = vmul.f32 %v1280, %v1281
    %v1283 = vmul.f32 %v1282, 0.044715
    %v1284 = vadd.f32 %v1280, %v1283
    %v1285 = vmul.f32 %v1284, 0.7978846
    %v1286 = vtanh.pop %v1285
    %v1287 = vadd.f32 %v1286, 1.0
    %v1288 = vmul.f32 %v1287, 0.5
    %v1289 = vmul.f32 %v1280, %v1288
    %v1290 = vpack.c.bf16 %v1289, %v1289
    %v1291 = vld [vmem:[#allocation17] sm:$0xf]
    %v1292 = vld [vmem:[#allocation17 + $0x4] sm:$0xf]
    %v1293 = vld [vmem:[#allocation17 + $0x8] sm:$0xf]
    %v1294 = vld [vmem:[#allocation17 + $0xc] sm:$0xf]
    %v1295 = vld [vmem:[#allocation19] sm:$0x1]
    %v1297 = vlaneseq
    %v1298 = vshrl.u32 %v1297, 7
    %v1299 = vsub.s32 0, %v1298
    %v1300 = vrot.slane %v1295, %v1299
    %v1306 = vunpack.c.l.b16 %v1291
    %v1307 = vunpack.c.l.b16 %v1292
    %v1308 = vunpack.c.l.b16 %v1293
    %v1309 = vunpack.c.l.b16 %v1294
    %v1310 = vpack.c.b16 %v1307, %v1306
    %v1311 = vpack.c.b16 %v1309, %v1308
    %v1315 = vsel %vm289, %v1290, 0
    %1317 = vmatprep.subr.bf16.mxu0 0
    %1318 = vmatpush1.bf16.msra.mxu0 0
    %1319 = vmatprep.subr.bf16.mxu0 0
    %1320 = vmatpush1.bf16.msra.mxu0 0
    %1321 = vmatprep.subr.bf16.mxu0 0
    %1322 = vmatpush1.bf16.msra.mxu0 0
    %1323 = vmatprep.subr.bf16.mxu0 0
    %1324 = vmatpush1.bf16.msra.mxu0 0
    %1325 = vmatprep.subr.bf16.mxu0 0
    %1326 = vmatpush1.bf16.msra.mxu0 0
    %1327 = vmatprep.subr.bf16.mxu0 0
    %1328 = vmatpush1.bf16.msra.mxu0 0
    %1329 = vmatprep.subr.bf16.mxu0 0
    %1330 = vmatpush1.bf16.msra.mxu0 %v1311
    %1331 = vmatprep.subr.bf16.mxu0 0
    %1332 = vmatpush1.bf16.msra.mxu0 %v1310
    %1333 = vmatprep.subr.bf16.mxu0 0
    %1334 = vmatpush2.bf16.msra.mxu0 0
    %1335 = vmatprep.subr.bf16.mxu0 0
    %1336 = vmatpush2.bf16.msra.mxu0 0
    %1337 = vmatprep.subr.bf16.mxu0 0
    %1338 = vmatpush2.bf16.msra.mxu0 0
    %1339 = vmatprep.subr.bf16.mxu0 0
    %1340 = vmatpush2.bf16.msra.mxu0 0
    %1341 = vmatprep.subr.bf16.mxu0 0
    %1342 = vmatpush2.bf16.msra.mxu0 0
    %1343 = vmatprep.subr.bf16.mxu0 0
    %1344 = vmatpush2.bf16.msra.mxu0 0
    %1345 = vmatprep.subr.bf16.mxu0 0
    %1346 = vmatpush2.bf16.msra.mxu0 0
    %1347 = vmatprep.subr.bf16.mxu0 0
    %1348 = vmatpush2.bf16.msra.mxu0 0
    %1349 = vmatprep.mubr.bf16.mxu0 0
    %1350 = vmatmul.mubr.bf16.gmra.mxu0 %v1315
    %v1351 = vpop.f32.mrf.mxu0
    %v1352 = vadd.f32 %v1300, %v1351
    %v1353 = vpop.f32.mrf.mxu0
    %v1354 = vpop.f32.mrf.mxu0
    %v1355 = vpop.f32.mrf.mxu0
    %1356 = vdwg.mxu0
    %v1357 = vmul.f32 %v1352, %v1352
    %v1358 = vmul.f32 %v1352, %v1357
    %v1359 = vmul.f32 %v1358, 0.044715
    %v1360 = vadd.f32 %v1352, %v1359
    %v1361 = vmul.f32 %v1360, 0.7978846
    %v1362 = vtanh.pop %v1361
    %v1363 = vadd.f32 %v1362, 1.0
    %v1364 = vmul.f32 %v1363, 0.5
    %v1365 = vmul.f32 %v1352, %v1364
    %v1366 = vpack.c.bf16 %v1365, %v1365
    %v1367 = vld [vmem:[%s14] sm:$0xf]
    %v1368 = vld [vmem:[%s14 + $0x4] sm:$0xf]
    %v1369 = vld [vmem:[%s14 + $0x8] sm:$0xf]
    %v1370 = vld [vmem:[%s14 + $0xc] sm:$0xf]
    %v1371 = vld [vmem:[%s15] sm:$0x1]
    %v1373 = vlaneseq
    %v1374 = vshrl.u32 %v1373, 7
    %v1375 = vsub.s32 0, %v1374
    %v1376 = vrot.slane %v1371, %v1375
    %v1382 = vunpack.c.l.b16 %v1367
    %v1383 = vunpack.c.l.b16 %v1368
    %v1384 = vunpack.c.l.b16 %v1369
    %v1385 = vunpack.c.l.b16 %v1370
    %v1386 = vpack.c.b16 %v1383, %v1382
    %v1387 = vpack.c.b16 %v1385, %v1384
    %v1391 = vsel %vm289, %v1366, 0
    %1393 = vmatprep.subr.bf16.mxu0 0
    %1394 = vmatpush1.bf16.msra.mxu0 0
    %1395 = vmatprep.subr.bf16.mxu0 0
    %1396 = vmatpush1.bf16.msra.mxu0 0
    %1397 = vmatprep.subr.bf16.mxu0 0
    %1398 = vmatpush1.bf16.msra.mxu0 0
    %1399 = vmatprep.subr.bf16.mxu0 0
    %1400 = vmatpush1.bf16.msra.mxu0 0
    %1401 = vmatprep.subr.bf16.mxu0 0
    %1402 = vmatpush1.bf16.msra.mxu0 0
    %1403 = vmatprep.subr.bf16.mxu0 0
    %1404 = vmatpush1.bf16.msra.mxu0 0
    %1405 = vmatprep.subr.bf16.mxu0 0
    %1406 = vmatpush1.bf16.msra.mxu0 %v1387
    %1407 = vmatprep.subr.bf16.mxu0 0
    %1408 = vmatpush1.bf16.msra.mxu0 %v1386
    %1409 = vmatprep.subr.bf16.mxu0 0
    %1410 = vmatpush2.bf16.msra.mxu0 0
    %1411 = vmatprep.subr.bf16.mxu0 0
    %1412 = vmatpush2.bf16.msra.mxu0 0
    %1413 = vmatprep.subr.bf16.mxu0 0
    %1414 = vmatpush2.bf16.msra.mxu0 0
    %1415 = vmatprep.subr.bf16.mxu0 0
    %1416 = vmatpush2.bf16.msra.mxu0 0
    %1417 = vmatprep.subr.bf16.mxu0 0
    %1418 = vmatpush2.bf16.msra.mxu0 0
    %1419 = vmatprep.subr.bf16.mxu0 0
    %1420 = vmatpush2.bf16.msra.mxu0 0
    %1421 = vmatprep.subr.bf16.mxu0 0
    %1422 = vmatpush2.bf16.msra.mxu0 0
    %1423 = vmatprep.subr.bf16.mxu0 0
    %1424 = vmatpush2.bf16.msra.mxu0 0
    %1425 = vmatprep.mubr.bf16.mxu0 0
    %1426 = vmatmul.mubr.bf16.gmra.mxu0 %v1391
    %v1427 = vpop.f32.mrf.mxu0
    %v1428 = vadd.f32 %v1376, %v1427
    %v1429 = vpop.f32.mrf.mxu0
    %v1430 = vpop.f32.mrf.mxu0
    %v1431 = vpop.f32.mrf.mxu0
    %1432 = vdwg.mxu0
    %1433 = vst [vmem:[#allocation21] sm:$0x3] %v1428
    // Predicated region
    $region110: #{tpu_custom_call.1} parent=1 // pred_check
      _
    $region111: #{tpu_custom_call.1} parent=1 // pred_check_branch
      %1435 = sbr.rel (0) target = $region113
    $region112: #{tpu_custom_call.1} parent=1 // pred_region
      %s1437 = ssub.s32 256, 256
      %1438 = vsyncadd [#allocation4], %s1437
      %s1439 = sshll.u32 [#allocation20], 4
      %s1440 = int_to_ptr.vmem [resolvable:$true] %s1439
      %1445 = dma.vmem_to_hbm [thread:$0]  %s1440, 256, %s16, [#allocation4], 128, 128, 8
    $region113: #{tpu_custom_call.1} parent=1 // pred_fallthru
      _
    // Predicated region
    $region114: #{tpu_custom_call.1} parent=1 // pred_check
      _
    $region115: #{tpu_custom_call.1} parent=1 // pred_check_branch
      %1447 = sbr.rel (0) target = $region117
    $region116: #{tpu_custom_call.1} parent=1 // pred_region
      %s1449 = ssub.s32 32, 32
      %1450 = vsyncadd [#allocation22], %s1449
      %s1452 = sshll.u32 [#allocation21], 4
      %s1453 = int_to_ptr.vmem [resolvable:$true] %s1452
      %1455 = dma.vmem_to_hbm [thread:$0]  %s1453, 32, %s17, [#allocation22]
    $region117: #{tpu_custom_call.1} parent=1 // pred_fallthru
      _
    // Predicated region
    $region118: #{tpu_custom_call.1} parent=1 // pred_check
      _
    $region119: #{tpu_custom_call.1} parent=1 // pred_check_branch
      %1457 = sbr.rel (0) target = $region121
    $region120: #{tpu_custom_call.1} parent=1 // pred_region
      %1458 = dma.done [#allocation4], 256
    $region121: #{tpu_custom_call.1} parent=1 // pred_fallthru
      _
    // Predicated region
    $region122: #{tpu_custom_call.1} parent=1 // pred_check
      _
    $region123: #{tpu_custom_call.1} parent=1 // pred_check_branch
      %1460 = sbr.rel (0) target = $region125
    $region124: #{tpu_custom_call.1} parent=1 // pred_region
      %1461 = dma.done [#allocation22], 32
    $region125: #{tpu_custom_call.1} parent=1 // pred_fallthru
      _
    %1462 = vsyncpa [#allocation3], 1
    %1463 = vsyncpa [#allocation6], 1
    %1464 = vsyncpa [#allocation9], 1
    %1465 = vsyncpa [#allocation12], 1
    %1466 = vsyncpa [#allocation15], 1
    %1467 = vsyncpa [#allocation18], 1
    %1468 = vsyncpa [#allocation4], 1
    %1469 = vsyncpa [#allocation22], 1

</llo_original>
